<compile_context>
chip_gen: v5e
topology: v5e:2x2
jax: 0.10.0
libtpu: 0.0.40
codegen_flags: <defaults>
</compile_context>

<pallas_src>
import functools

import numpy as np
import jax
import jax.numpy as jnp
from jax.experimental import pallas as pl
from jax.experimental.pallas import tpu as pltpu

BN_EPS = 1e-5


def _round_up(x, m):
    return ((x + m - 1) // m) * m


def _deepfm_kernel(idx_ref, aux_ref, tbl_ref,
                   w1_ref, b1_ref, g1_ref, be1_ref,
                   w2_ref, b2_ref, g2_ref, be2_ref,
                   w3_ref, out_ref):
    TB, F = idx_ref.shape
    R_pad, E_pad = tbl_ref.shape
    H1 = b1_ref.shape[1]
    f32 = jnp.float32
    trans_b = (((1,), (1,)), ((), ()))        # contract minor dims: A @ B^T

    # hoisted constants
    lane_iota = jax.lax.broadcasted_iota(jnp.int32, (TB, R_pad), 1)
    ones_e = jnp.ones((1, E_pad), f32)
    ones_b = jnp.ones((1, TB), f32)
    inv_tb = 1.0 / TB

    tbl = tbl_ref[...]                                            # (R_pad, E_pad) bf16, resident

    # ---- in-kernel embedding gather (one-hot bf16 MXU matmul per field) + fused first Linear ----
    sum_emb = jnp.zeros((TB, E_pad), f32)                         # sum over fields (for FM)
    sum_sq = jnp.zeros((TB, E_pad), f32)                          # sum over fields of x^2
    h = jnp.zeros((TB, H1), f32)                                  # first Linear accumulator
    for f in range(F):                                            # static unroll, F is small
        eq = lane_iota == idx_ref[:, f:f + 1]                     # (TB, R_pad) bool
        onehot = jnp.where(eq, 1.0, 0.0).astype(jnp.bfloat16)
        emb = jnp.dot(onehot, tbl, preferred_element_type=f32)    # (TB, E_pad), exact bf16 copy
        sum_emb = sum_emb + emb
        sum_sq = sum_sq + emb * emb
        h = h + jnp.dot(emb.astype(jnp.bfloat16), w1_ref[f],      # bf16 x bf16 MXU, f32 acc
                        preferred_element_type=f32)

    # ---- FactorizationMachine (reduce_sum=True), lane-dense (1, TB) rows via A @ B^T matvecs ----
    square_of_sum = jax.lax.dot_general(ones_e, sum_emb * sum_emb, trans_b,
                                        preferred_element_type=f32)            # (1, TB)
    sum_of_square = jax.lax.dot_general(ones_e, sum_sq, trans_b,
                                        preferred_element_type=f32)            # (1, TB)
    fm = 0.5 * (square_of_sum - sum_of_square)

    # ---- MLP: [Linear -> BatchNorm1d(batch stats) -> ReLU -> Dropout(eval)] x2 -> Linear(1) ----
    def bn_relu(x, g_ref, be_ref):
        mu = jnp.dot(ones_b, x, preferred_element_type=f32) * inv_tb           # (1, H)
        m2 = jnp.dot(ones_b, x * x, preferred_element_type=f32) * inv_tb       # (1, H)
        var = jnp.maximum(m2 - mu * mu, 0.0)                                   # clamp cancellation
        x = (x - mu) * jax.lax.rsqrt(var + BN_EPS) * g_ref[...] + be_ref[...]
        return jnp.maximum(x, 0.0)                                             # Dropout = identity

    h = bn_relu(h + b1_ref[...], g1_ref, be1_ref)                              # (TB, H1)
    h = jnp.dot(h.astype(jnp.bfloat16), w2_ref[...],
                preferred_element_type=f32) + b2_ref[...]                      # (TB, H2)
    h = bn_relu(h, g2_ref, be2_ref)
    mlp = jax.lax.dot_general(w3_ref[...], h, trans_b,
                              preferred_element_type=f32)                      # (1, TB)

    # ---- combine heads; stable logit-space BCE, fully lane-dense ----
    lin = aux_ref[0:1, :]                      # (1, TB): FeaturesLinear sum + lin_bias + b3
    y = aux_ref[1:2, :]                        # (1, TB) labels
    z = lin + fm + mlp
    bce = jnp.maximum(z, 0.0) - z * y + jnp.log(1.0 + jnp.exp(-jnp.abs(z)))
    out_ref[0] = bce                           # (1, TB) unmasked lane-dense store


def _pick_tb(B):
    # >= 2 tiles keeps the parallel axis useful on dual-TC v7x; large tiles amortize the
    # per-grid-step overhead on single-TC v5e/v6e.
    if B <= 128:
        return B
    assert B % 128 == 0, "batch must be a multiple of 128 (or <= 128)"
    tb = max(128, (min(512, B // 2) // 128) * 128)
    while B % tb:
        tb -= 128
    return tb


@functools.partial(jax.jit, static_argnums=(3, 4))
def deepfm_forward(X, y, params, ln_emb, emb_size):
    """X: int32 (B, F) per-field indices; y: float32 (B, 1) labels. Returns mean BCE loss."""
    del emb_size  # shapes are carried by the (padded) params
    B, F = X.shape

    offs = np.zeros((F,), np.int32)
    offs[1:] = np.cumsum(np.asarray(ln_emb[:-1], np.int64)).astype(np.int32)
    idx = X.astype(jnp.int32) + jnp.asarray(offs)[None, :]                     # (B, F)

    # FeaturesLinear pre-sum (tiny gather) folded with the two scalar biases; packed with labels
    lin = jnp.sum(params["lin_table"][idx][:, :, 0], axis=1)
    lin = lin + params["lin_bias"][0, 0] + params["b3"][0, 0]
    aux = jnp.stack([lin, y[:, 0]], axis=0).astype(jnp.float32)                # (2, B)

    TB = _pick_tb(B)
    nt = B // TB
    R_pad, E_pad = params["emb_table"].shape
    H1 = params["w1"].shape[2]
    H2 = params["w2"].shape[1]

    cst = lambda i: (0, 0)
    in_specs = [
        pl.BlockSpec((TB, F), lambda i: (i, 0)),              # per-field indices (int32)
        pl.BlockSpec((2, TB), lambda i: (0, i)),              # [lin+biases; labels], lane-dense
        pl.BlockSpec((R_pad, E_pad), cst),                    # embedding table (bf16, resident)
        pl.BlockSpec((F, E_pad, H1), lambda i: (0, 0, 0)),    # w1 (bf16)
        pl.BlockSpec((1, H1), cst), pl.BlockSpec((1, H1), cst), pl.BlockSpec((1, H1), cst),
        pl.BlockSpec((H1, H2), cst),                          # w2 (bf16)
        pl.BlockSpec((1, H2), cst), pl.BlockSpec((1, H2), cst), pl.BlockSpec((1, H2), cst),
        pl.BlockSpec((1, H2), cst),                           # w3 (f32 row)
    ]

    bce = pl.pallas_call(
        _deepfm_kernel,
        out_shape=jax.ShapeDtypeStruct((nt, 1, TB), jnp.float32),
        grid=(nt,),
        in_specs=in_specs,
        out_specs=pl.BlockSpec((1, 1, TB), lambda i: (i, 0, 0)),
        compiler_params=pltpu.CompilerParams(dimension_semantics=("parallel",)),
    )(idx, aux, params["emb_table"],
      params["w1"], params["b1"], params["g1"], params["be1"],
      params["w2"], params["b2"], params["g2"], params["be2"],
      params["w3"])

    return jnp.sum(bce) / B                                                    # exact mean BCE


def init_params(key, ln_emb, emb_size, mlp_dims):
    F = len(ln_emb)
    E = emb_size
    total = int(sum(ln_emb))
    R_pad = max(128, _round_up(total, 128))
    E_pad = max(128, _round_up(E, 128))
    H1 = max(128, _round_up(mlp_dims[0], 128))
    H2 = max(128, _round_up(mlp_dims[1], 128))
    ks = jax.random.split(key, 5)

    emb = 0.05 * jax.random.normal(ks[0], (total, E), jnp.float32)
    tbl = jnp.zeros((R_pad, E_pad), jnp.float32).at[:total, :E].set(emb).astype(jnp.bfloat16)

    w1 = 0.05 * jax.random.normal(ks[2], (F, E, mlp_dims[0]), jnp.float32)
    w1p = (jnp.zeros((F, E_pad, H1), jnp.float32)
           .at[:, :E, :mlp_dims[0]].set(w1).astype(jnp.bfloat16))
    w2 = 0.05 * jax.random.normal(ks[3], (mlp_dims[0], mlp_dims[1]), jnp.float32)
    w2p = (jnp.zeros((H1, H2), jnp.float32)
           .at[:mlp_dims[0], :mlp_dims[1]].set(w2).astype(jnp.bfloat16))
    w3 = 0.05 * jax.random.normal(ks[4], (1, mlp_dims[1]), jnp.float32)
    w3p = jnp.zeros((1, H2), jnp.float32).at[:, :mlp_dims[1]].set(w3)

    return {
        # bf16 embedding table, zero-padded to a lane-dense (R_pad, E_pad) VMEM-resident block
        "emb_table": tbl,
        "lin_table": 0.05 * jax.random.normal(ks[1], (total, 1), jnp.float32),
        "lin_bias": jnp.zeros((1, 1), jnp.float32),
        # zero-padded, lane-dense MLP weights; padded rows/cols stay exactly zero end-to-end
        "w1": w1p, "b1": jnp.zeros((1, H1), jnp.float32),
        "g1": jnp.ones((1, H1), jnp.float32), "be1": jnp.zeros((1, H1), jnp.float32),
        "w2": w2p, "b2": jnp.zeros((1, H2), jnp.float32),
        "g2": jnp.ones((1, H2), jnp.float32), "be2": jnp.zeros((1, H2), jnp.float32),
        "w3": w3p, "b3": jnp.zeros((1, 1), jnp.float32),
    }


if __name__ == "__main__":
    ln_emb = (10, 20, 30, 40)      # field vocab sizes (F = 4, sum = 100)
    emb_size = 16                  # embedding dim E
    mlp_dims = (32, 16)            # MLP hidden dims (padded to 128 internally)
    batch = 256                    # 2 batch tiles of 128 -> exercises the grid / parallel axis

    key = jax.random.PRNGKey(0)
    kp, kx, ky = jax.random.split(key, 3)
    params = init_params(kp, ln_emb, emb_size, mlp_dims)

    # per-field categorical indices (B, F), each column in [0, ln_emb[f])
    xkeys = jax.random.split(kx, len(ln_emb))
    X = jnp.stack(
        [jax.random.randint(xkeys[f], (batch,), 0, ln_emb[f], dtype=jnp.int32)
         for f in range(len(ln_emb))], axis=1)
    y = jax.random.bernoulli(ky, 0.5, (batch, 1)).astype(jnp.float32)

    loss = deepfm_forward(X, y, params, ln_emb, emb_size)
    jax.block_until_ready(loss)
    assert bool(jnp.isfinite(loss)), "loss is not finite"
    print("KERNEL_OK")
</pallas_src>

<mosaic_0001>
module attributes {stable_mosaic.version = 11 : i64} {
  func.func @_deepfm_kernel(%arg0: i32, %arg1: memref<128x4xi32, #tpu.memory_space<vmem>>, %arg2: memref<2x128xf32, #tpu.memory_space<vmem>>, %arg3: memref<128x128xbf16, #tpu.memory_space<vmem>>, %arg4: memref<4x128x128xbf16, #tpu.memory_space<vmem>>, %arg5: memref<1x128xf32, #tpu.memory_space<vmem>>, %arg6: memref<1x128xf32, #tpu.memory_space<vmem>>, %arg7: memref<1x128xf32, #tpu.memory_space<vmem>>, %arg8: memref<128x128xbf16, #tpu.memory_space<vmem>>, %arg9: memref<1x128xf32, #tpu.memory_space<vmem>>, %arg10: memref<1x128xf32, #tpu.memory_space<vmem>>, %arg11: memref<1x128xf32, #tpu.memory_space<vmem>>, %arg12: memref<1x128xf32, #tpu.memory_space<vmem>>, %arg13: memref<1x1x128xf32, #tpu.memory_space<vmem>>) attributes {dimension_semantics = [#tpu.dimension_semantics<parallel>], iteration_bounds = array<i64: 2>, scalar_prefetch = 0 : i64, scratch_operands = 0 : i64, tpu.core_type = #tpu.core_type<tc>, window_params = [{transform_indices = @transform_0, window_bounds = array<i64: 128, 4>}, {transform_indices = @transform_1, window_bounds = array<i64: 2, 128>}, {pipeline_mode = #tpu.pipeline_mode<synchronous>, transform_indices = @transform_2, window_bounds = array<i64: 128, 128>}, {pipeline_mode = #tpu.pipeline_mode<synchronous>, transform_indices = @transform_3, window_bounds = array<i64: 4, 128, 128>}, {pipeline_mode = #tpu.pipeline_mode<synchronous>, transform_indices = @transform_4, window_bounds = array<i64: 1, 128>}, {pipeline_mode = #tpu.pipeline_mode<synchronous>, transform_indices = @transform_5, window_bounds = array<i64: 1, 128>}, {pipeline_mode = #tpu.pipeline_mode<synchronous>, transform_indices = @transform_6, window_bounds = array<i64: 1, 128>}, {pipeline_mode = #tpu.pipeline_mode<synchronous>, transform_indices = @transform_7, window_bounds = array<i64: 128, 128>}, {pipeline_mode = #tpu.pipeline_mode<synchronous>, transform_indices = @transform_8, window_bounds = array<i64: 1, 128>}, {pipeline_mode = #tpu.pipeline_mode<synchronous>, transform_indices = @transform_9, window_bounds = array<i64: 1, 128>}, {pipeline_mode = #tpu.pipeline_mode<synchronous>, transform_indices = @transform_10, window_bounds = array<i64: 1, 128>}, {pipeline_mode = #tpu.pipeline_mode<synchronous>, transform_indices = @transform_11, window_bounds = array<i64: 1, 128>}, {transform_indices = @transform_12, window_bounds = array<i64: 1, 1, 128>}]} {
    %0 = tpu.iota {dimensions = array<i32: 1>} : vector<128x128xi32>
    %cst = arith.constant 1.000000e+00 : f32
    %1 = vector.broadcast %cst : f32 to vector<1x128xf32>
    %cst_0 = arith.constant 1.000000e+00 : f32
    %2 = vector.broadcast %cst_0 : f32 to vector<1x128xf32>
    %c0 = arith.constant 0 : index
    %c0_1 = arith.constant 0 : index
    %3 = vector.load %arg3[%c0, %c0_1] : memref<128x128xbf16, #tpu.memory_space<vmem>>, vector<128x128xbf16>
    %cst_2 = arith.constant 0.000000e+00 : f32
    %4 = vector.broadcast %cst_2 : f32 to vector<128x128xf32>
    %cst_3 = arith.constant 0.000000e+00 : f32
    %5 = vector.broadcast %cst_3 : f32 to vector<128x128xf32>
    %cst_4 = arith.constant 0.000000e+00 : f32
    %6 = vector.broadcast %cst_4 : f32 to vector<128x128xf32>
    %c0_5 = arith.constant 0 : index
    %c0_6 = arith.constant 0 : index
    %7 = vector.load %arg1[%c0_5, %c0_6] : memref<128x4xi32, #tpu.memory_space<vmem>>, vector<128x1xi32>
    %8 = vector.broadcast %7 : vector<128x1xi32> to vector<128x128xi32>
    %9 = arith.cmpi eq, %0, %8 : vector<128x128xi32>
    %cst_7 = arith.constant 1.000000e+00 : f32
    %cst_8 = arith.constant 0.000000e+00 : f32
    %10 = vector.broadcast %cst_7 : f32 to vector<128x128xf32>
    %11 = vector.broadcast %cst_8 : f32 to vector<128x128xf32>
    %12 = arith.select %9, %10, %11 : vector<128x128xi1>, vector<128x128xf32>
    %13 = arith.truncf %12 : vector<128x128xf32> to vector<128x128xbf16>
    %cst_9 = arith.constant dense<0.000000e+00> : vector<128x128xf32>
    %14 = tpu.matmul %13, %3, %cst_9 {dimension_numbers = #tpu.dot_dimension_numbers<[1], [0], [0], [1], [0, 0, 1, 1], [], []>} : vector<128x128xbf16>, vector<128x128xbf16>, vector<128x128xf32> -> vector<128x128xf32>
    %15 = arith.addf %4, %14 : vector<128x128xf32>
    %16 = arith.mulf %14, %14 : vector<128x128xf32>
    %17 = arith.addf %5, %16 : vector<128x128xf32>
    %18 = arith.truncf %14 : vector<128x128xf32> to vector<128x128xbf16>
    %c0_10 = arith.constant 0 : index
    %c0_11 = arith.constant 0 : index
    %c0_12 = arith.constant 0 : index
    %19 = vector.load %arg4[%c0_10, %c0_11, %c0_12] : memref<4x128x128xbf16, #tpu.memory_space<vmem>>, vector<1x128x128xbf16>
    %20 = vector.shape_cast %19 : vector<1x128x128xbf16> to vector<128x128xbf16>
    %cst_13 = arith.constant dense<0.000000e+00> : vector<128x128xf32>
    %21 = tpu.matmul %18, %20, %cst_13 {dimension_numbers = #tpu.dot_dimension_numbers<[1], [0], [0], [1], [0, 0, 1, 1], [], []>} : vector<128x128xbf16>, vector<128x128xbf16>, vector<128x128xf32> -> vector<128x128xf32>
    %22 = arith.addf %6, %21 : vector<128x128xf32>
    %c0_14 = arith.constant 0 : index
    %c1 = arith.constant 1 : index
    %23 = vector.load %arg1[%c0_14, %c1] : memref<128x4xi32, #tpu.memory_space<vmem>>, vector<128x1xi32>
    %24 = vector.broadcast %23 : vector<128x1xi32> to vector<128x128xi32>
    %25 = arith.cmpi eq, %0, %24 : vector<128x128xi32>
    %cst_15 = arith.constant 1.000000e+00 : f32
    %cst_16 = arith.constant 0.000000e+00 : f32
    %26 = vector.broadcast %cst_15 : f32 to vector<128x128xf32>
    %27 = vector.broadcast %cst_16 : f32 to vector<128x128xf32>
    %28 = arith.select %25, %26, %27 : vector<128x128xi1>, vector<128x128xf32>
    %29 = arith.truncf %28 : vector<128x128xf32> to vector<128x128xbf16>
    %cst_17 = arith.constant dense<0.000000e+00> : vector<128x128xf32>
    %30 = tpu.matmul %29, %3, %cst_17 {dimension_numbers = #tpu.dot_dimension_numbers<[1], [0], [0], [1], [0, 0, 1, 1], [], []>} : vector<128x128xbf16>, vector<128x128xbf16>, vector<128x128xf32> -> vector<128x128xf32>
    %31 = arith.addf %15, %30 : vector<128x128xf32>
    %32 = arith.mulf %30, %30 : vector<128x128xf32>
    %33 = arith.addf %17, %32 : vector<128x128xf32>
    %34 = arith.truncf %30 : vector<128x128xf32> to vector<128x128xbf16>
    %c1_18 = arith.constant 1 : index
    %c0_19 = arith.constant 0 : index
    %c0_20 = arith.constant 0 : index
    %35 = vector.load %arg4[%c1_18, %c0_19, %c0_20] : memref<4x128x128xbf16, #tpu.memory_space<vmem>>, vector<1x128x128xbf16>
    %36 = vector.shape_cast %35 : vector<1x128x128xbf16> to vector<128x128xbf16>
    %cst_21 = arith.constant dense<0.000000e+00> : vector<128x128xf32>
    %37 = tpu.matmul %34, %36, %cst_21 {dimension_numbers = #tpu.dot_dimension_numbers<[1], [0], [0], [1], [0, 0, 1, 1], [], []>} : vector<128x128xbf16>, vector<128x128xbf16>, vector<128x128xf32> -> vector<128x128xf32>
    %38 = arith.addf %22, %37 : vector<128x128xf32>
    %c0_22 = arith.constant 0 : index
    %c2 = arith.constant 2 : index
    %39 = vector.load %arg1[%c0_22, %c2] : memref<128x4xi32, #tpu.memory_space<vmem>>, vector<128x1xi32>
    %40 = vector.broadcast %39 : vector<128x1xi32> to vector<128x128xi32>
    %41 = arith.cmpi eq, %0, %40 : vector<128x128xi32>
    %cst_23 = arith.constant 1.000000e+00 : f32
    %cst_24 = arith.constant 0.000000e+00 : f32
    %42 = vector.broadcast %cst_23 : f32 to vector<128x128xf32>
    %43 = vector.broadcast %cst_24 : f32 to vector<128x128xf32>
    %44 = arith.select %41, %42, %43 : vector<128x128xi1>, vector<128x128xf32>
    %45 = arith.truncf %44 : vector<128x128xf32> to vector<128x128xbf16>
    %cst_25 = arith.constant dense<0.000000e+00> : vector<128x128xf32>
    %46 = tpu.matmul %45, %3, %cst_25 {dimension_numbers = #tpu.dot_dimension_numbers<[1], [0], [0], [1], [0, 0, 1, 1], [], []>} : vector<128x128xbf16>, vector<128x128xbf16>, vector<128x128xf32> -> vector<128x128xf32>
    %47 = arith.addf %31, %46 : vector<128x128xf32>
    %48 = arith.mulf %46, %46 : vector<128x128xf32>
    %49 = arith.addf %33, %48 : vector<128x128xf32>
    %50 = arith.truncf %46 : vector<128x128xf32> to vector<128x128xbf16>
    %c2_26 = arith.constant 2 : index
    %c0_27 = arith.constant 0 : index
    %c0_28 = arith.constant 0 : index
    %51 = vector.load %arg4[%c2_26, %c0_27, %c0_28] : memref<4x128x128xbf16, #tpu.memory_space<vmem>>, vector<1x128x128xbf16>
    %52 = vector.shape_cast %51 : vector<1x128x128xbf16> to vector<128x128xbf16>
    %cst_29 = arith.constant dense<0.000000e+00> : vector<128x128xf32>
    %53 = tpu.matmul %50, %52, %cst_29 {dimension_numbers = #tpu.dot_dimension_numbers<[1], [0], [0], [1], [0, 0, 1, 1], [], []>} : vector<128x128xbf16>, vector<128x128xbf16>, vector<128x128xf32> -> vector<128x128xf32>
    %54 = arith.addf %38, %53 : vector<128x128xf32>
    %c0_30 = arith.constant 0 : index
    %c3 = arith.constant 3 : index
    %55 = vector.load %arg1[%c0_30, %c3] : memref<128x4xi32, #tpu.memory_space<vmem>>, vector<128x1xi32>
    %56 = vector.broadcast %55 : vector<128x1xi32> to vector<128x128xi32>
    %57 = arith.cmpi eq, %0, %56 : vector<128x128xi32>
    %cst_31 = arith.constant 1.000000e+00 : f32
    %cst_32 = arith.constant 0.000000e+00 : f32
    %58 = vector.broadcast %cst_31 : f32 to vector<128x128xf32>
    %59 = vector.broadcast %cst_32 : f32 to vector<128x128xf32>
    %60 = arith.select %57, %58, %59 : vector<128x128xi1>, vector<128x128xf32>
    %61 = arith.truncf %60 : vector<128x128xf32> to vector<128x128xbf16>
    %cst_33 = arith.constant dense<0.000000e+00> : vector<128x128xf32>
    %62 = tpu.matmul %61, %3, %cst_33 {dimension_numbers = #tpu.dot_dimension_numbers<[1], [0], [0], [1], [0, 0, 1, 1], [], []>} : vector<128x128xbf16>, vector<128x128xbf16>, vector<128x128xf32> -> vector<128x128xf32>
    %63 = arith.addf %47, %62 : vector<128x128xf32>
    %64 = arith.mulf %62, %62 : vector<128x128xf32>
    %65 = arith.addf %49, %64 : vector<128x128xf32>
    %66 = arith.truncf %62 : vector<128x128xf32> to vector<128x128xbf16>
    %c3_34 = arith.constant 3 : index
    %c0_35 = arith.constant 0 : index
    %c0_36 = arith.constant 0 : index
    %67 = vector.load %arg4[%c3_34, %c0_35, %c0_36] : memref<4x128x128xbf16, #tpu.memory_space<vmem>>, vector<1x128x128xbf16>
    %68 = vector.shape_cast %67 : vector<1x128x128xbf16> to vector<128x128xbf16>
    %cst_37 = arith.constant dense<0.000000e+00> : vector<128x128xf32>
    %69 = tpu.matmul %66, %68, %cst_37 {dimension_numbers = #tpu.dot_dimension_numbers<[1], [0], [0], [1], [0, 0, 1, 1], [], []>} : vector<128x128xbf16>, vector<128x128xbf16>, vector<128x128xf32> -> vector<128x128xf32>
    %70 = arith.addf %54, %69 : vector<128x128xf32>
    %71 = arith.mulf %63, %63 : vector<128x128xf32>
    %cst_38 = arith.constant dense<0.000000e+00> : vector<1x128xf32>
    %72 = tpu.matmul %1, %71, %cst_38 {dimension_numbers = #tpu.dot_dimension_numbers<[1], [1], [0], [0], [0, 0, 1, 0], [], []>} : vector<1x128xf32>, vector<128x128xf32>, vector<1x128xf32> -> vector<1x128xf32>
    %cst_39 = arith.constant dense<0.000000e+00> : vector<1x128xf32>
    %73 = tpu.matmul %1, %65, %cst_39 {dimension_numbers = #tpu.dot_dimension_numbers<[1], [1], [0], [0], [0, 0, 1, 0], [], []>} : vector<1x128xf32>, vector<128x128xf32>, vector<1x128xf32> -> vector<1x128xf32>
    %74 = arith.subf %72, %73 : vector<1x128xf32>
    %cst_40 = arith.constant 5.000000e-01 : f32
    %75 = vector.broadcast %cst_40 : f32 to vector<1x128xf32>
    %76 = arith.mulf %75, %74 : vector<1x128xf32>
    %c0_41 = arith.constant 0 : index
    %c0_42 = arith.constant 0 : index
    %77 = vector.load %arg5[%c0_41, %c0_42] : memref<1x128xf32, #tpu.memory_space<vmem>>, vector<1x128xf32>
    %78 = vector.broadcast %77 : vector<1x128xf32> to vector<128x128xf32>
    %79 = arith.addf %70, %78 : vector<128x128xf32>
    %cst_43 = arith.constant dense<0.000000e+00> : vector<1x128xf32>
    %80 = tpu.matmul %2, %79, %cst_43 {dimension_numbers = #tpu.dot_dimension_numbers<[1], [0], [0], [1], [0, 0, 1, 1], [], []>} : vector<1x128xf32>, vector<128x128xf32>, vector<1x128xf32> -> vector<1x128xf32>
    %cst_44 = arith.constant 7.812500e-03 : f32
    %81 = vector.broadcast %cst_44 : f32 to vector<1x128xf32>
    %82 = arith.mulf %80, %81 : vector<1x128xf32>
    %83 = arith.mulf %79, %79 : vector<128x128xf32>
    %cst_45 = arith.constant dense<0.000000e+00> : vector<1x128xf32>
    %84 = tpu.matmul %2, %83, %cst_45 {dimension_numbers = #tpu.dot_dimension_numbers<[1], [0], [0], [1], [0, 0, 1, 1], [], []>} : vector<1x128xf32>, vector<128x128xf32>, vector<1x128xf32> -> vector<1x128xf32>
    %cst_46 = arith.constant 7.812500e-03 : f32
    %85 = vector.broadcast %cst_46 : f32 to vector<1x128xf32>
    %86 = arith.mulf %84, %85 : vector<1x128xf32>
    %87 = arith.mulf %82, %82 : vector<1x128xf32>
    %88 = arith.subf %86, %87 : vector<1x128xf32>
    %cst_47 = arith.constant 0.000000e+00 : f32
    %89 = vector.broadcast %cst_47 : f32 to vector<1x128xf32>
    %90 = arith.maximumf %88, %89 : vector<1x128xf32>
    %91 = vector.broadcast %82 : vector<1x128xf32> to vector<128x128xf32>
    %92 = arith.subf %79, %91 : vector<128x128xf32>
    %cst_48 = arith.constant 9.99999974E-6 : f32
    %93 = vector.broadcast %cst_48 : f32 to vector<1x128xf32>
    %94 = arith.addf %90, %93 : vector<1x128xf32>
    %95 = math.rsqrt %94 : vector<1x128xf32>
    %96 = vector.broadcast %95 : vector<1x128xf32> to vector<128x128xf32>
    %97 = arith.mulf %92, %96 : vector<128x128xf32>
    %c0_49 = arith.constant 0 : index
    %c0_50 = arith.constant 0 : index
    %98 = vector.load %arg6[%c0_49, %c0_50] : memref<1x128xf32, #tpu.memory_space<vmem>>, vector<1x128xf32>
    %99 = vector.broadcast %98 : vector<1x128xf32> to vector<128x128xf32>
    %100 = arith.mulf %97, %99 : vector<128x128xf32>
    %c0_51 = arith.constant 0 : index
    %c0_52 = arith.constant 0 : index
    %101 = vector.load %arg7[%c0_51, %c0_52] : memref<1x128xf32, #tpu.memory_space<vmem>>, vector<1x128xf32>
    %102 = vector.broadcast %101 : vector<1x128xf32> to vector<128x128xf32>
    %103 = arith.addf %100, %102 : vector<128x128xf32>
    %cst_53 = arith.constant 0.000000e+00 : f32
    %104 = vector.broadcast %cst_53 : f32 to vector<128x128xf32>
    %105 = arith.maximumf %103, %104 : vector<128x128xf32>
    %106 = arith.truncf %105 : vector<128x128xf32> to vector<128x128xbf16>
    %c0_54 = arith.constant 0 : index
    %c0_55 = arith.constant 0 : index
    %107 = vector.load %arg8[%c0_54, %c0_55] : memref<128x128xbf16, #tpu.memory_space<vmem>>, vector<128x128xbf16>
    %cst_56 = arith.constant dense<0.000000e+00> : vector<128x128xf32>
    %108 = tpu.matmul %106, %107, %cst_56 {dimension_numbers = #tpu.dot_dimension_numbers<[1], [0], [0], [1], [0, 0, 1, 1], [], []>} : vector<128x128xbf16>, vector<128x128xbf16>, vector<128x128xf32> -> vector<128x128xf32>
    %c0_57 = arith.constant 0 : index
    %c0_58 = arith.constant 0 : index
    %109 = vector.load %arg9[%c0_57, %c0_58] : memref<1x128xf32, #tpu.memory_space<vmem>>, vector<1x128xf32>
    %110 = vector.broadcast %109 : vector<1x128xf32> to vector<128x128xf32>
    %111 = arith.addf %108, %110 : vector<128x128xf32>
    %cst_59 = arith.constant dense<0.000000e+00> : vector<1x128xf32>
    %112 = tpu.matmul %2, %111, %cst_59 {dimension_numbers = #tpu.dot_dimension_numbers<[1], [0], [0], [1], [0, 0, 1, 1], [], []>} : vector<1x128xf32>, vector<128x128xf32>, vector<1x128xf32> -> vector<1x128xf32>
    %cst_60 = arith.constant 7.812500e-03 : f32
    %113 = vector.broadcast %cst_60 : f32 to vector<1x128xf32>
    %114 = arith.mulf %112, %113 : vector<1x128xf32>
    %115 = arith.mulf %111, %111 : vector<128x128xf32>
    %cst_61 = arith.constant dense<0.000000e+00> : vector<1x128xf32>
    %116 = tpu.matmul %2, %115, %cst_61 {dimension_numbers = #tpu.dot_dimension_numbers<[1], [0], [0], [1], [0, 0, 1, 1], [], []>} : vector<1x128xf32>, vector<128x128xf32>, vector<1x128xf32> -> vector<1x128xf32>
    %cst_62 = arith.constant 7.812500e-03 : f32
    %117 = vector.broadcast %cst_62 : f32 to vector<1x128xf32>
    %118 = arith.mulf %116, %117 : vector<1x128xf32>
    %119 = arith.mulf %114, %114 : vector<1x128xf32>
    %120 = arith.subf %118, %119 : vector<1x128xf32>
    %cst_63 = arith.constant 0.000000e+00 : f32
    %121 = vector.broadcast %cst_63 : f32 to vector<1x128xf32>
    %122 = arith.maximumf %120, %121 : vector<1x128xf32>
    %123 = vector.broadcast %114 : vector<1x128xf32> to vector<128x128xf32>
    %124 = arith.subf %111, %123 : vector<128x128xf32>
    %cst_64 = arith.constant 9.99999974E-6 : f32
    %125 = vector.broadcast %cst_64 : f32 to vector<1x128xf32>
    %126 = arith.addf %122, %125 : vector<1x128xf32>
    %127 = math.rsqrt %126 : vector<1x128xf32>
    %128 = vector.broadcast %127 : vector<1x128xf32> to vector<128x128xf32>
    %129 = arith.mulf %124, %128 : vector<128x128xf32>
    %c0_65 = arith.constant 0 : index
    %c0_66 = arith.constant 0 : index
    %130 = vector.load %arg10[%c0_65, %c0_66] : memref<1x128xf32, #tpu.memory_space<vmem>>, vector<1x128xf32>
    %131 = vector.broadcast %130 : vector<1x128xf32> to vector<128x128xf32>
    %132 = arith.mulf %129, %131 : vector<128x128xf32>
    %c0_67 = arith.constant 0 : index
    %c0_68 = arith.constant 0 : index
    %133 = vector.load %arg11[%c0_67, %c0_68] : memref<1x128xf32, #tpu.memory_space<vmem>>, vector<1x128xf32>
    %134 = vector.broadcast %133 : vector<1x128xf32> to vector<128x128xf32>
    %135 = arith.addf %132, %134 : vector<128x128xf32>
    %cst_69 = arith.constant 0.000000e+00 : f32
    %136 = vector.broadcast %cst_69 : f32 to vector<128x128xf32>
    %137 = arith.maximumf %135, %136 : vector<128x128xf32>
    %c0_70 = arith.constant 0 : index
    %c0_71 = arith.constant 0 : index
    %138 = vector.load %arg12[%c0_70, %c0_71] : memref<1x128xf32, #tpu.memory_space<vmem>>, vector<1x128xf32>
    %cst_72 = arith.constant dense<0.000000e+00> : vector<1x128xf32>
    %139 = tpu.matmul %138, %137, %cst_72 {dimension_numbers = #tpu.dot_dimension_numbers<[1], [1], [0], [0], [0, 0, 1, 0], [], []>} : vector<1x128xf32>, vector<128x128xf32>, vector<1x128xf32> -> vector<1x128xf32>
    %c0_73 = arith.constant 0 : index
    %c0_74 = arith.constant 0 : index
    %140 = vector.load %arg2[%c0_73, %c0_74] : memref<2x128xf32, #tpu.memory_space<vmem>>, vector<1x128xf32>
    %c1_75 = arith.constant 1 : index
    %c0_76 = arith.constant 0 : index
    %141 = vector.load %arg2[%c1_75, %c0_76] : memref<2x128xf32, #tpu.memory_space<vmem>>, vector<1x128xf32>
    %142 = arith.addf %140, %76 : vector<1x128xf32>
    %143 = arith.addf %142, %139 : vector<1x128xf32>
    %cst_77 = arith.constant 0.000000e+00 : f32
    %144 = vector.broadcast %cst_77 : f32 to vector<1x128xf32>
    %145 = arith.maximumf %143, %144 : vector<1x128xf32>
    %146 = arith.mulf %143, %141 : vector<1x128xf32>
    %147 = arith.subf %145, %146 : vector<1x128xf32>
    %148 = math.absf %143 : vector<1x128xf32>
    %cst_78 = arith.constant 0.000000e+00 : f32
    %149 = vector.broadcast %cst_78 : f32 to vector<1x128xf32>
    %150 = arith.subf %149, %148 : vector<1x128xf32>
    %151 = math.exp %150 : vector<1x128xf32>
    %cst_79 = arith.constant 1.000000e+00 : f32
    %152 = vector.broadcast %cst_79 : f32 to vector<1x128xf32>
    %153 = arith.addf %152, %151 : vector<1x128xf32>
    %154 = math.log %153 : vector<1x128xf32>
    %155 = arith.addf %147, %154 : vector<1x128xf32>
    %c0_80 = arith.constant 0 : index
    %c0_81 = arith.constant 0 : index
    %c0_82 = arith.constant 0 : index
    %156 = vector.load %arg13[%c0_80, %c0_81, %c0_82] : memref<1x1x128xf32, #tpu.memory_space<vmem>>, vector<1x1x128xf32>
    %157 = vector.shape_cast %156 : vector<1x1x128xf32> to vector<1x128xf32>
    %158 = vector.shape_cast %155 : vector<1x128xf32> to vector<1x1x128xf32>
    tpu.vector_store %arg13[%c0_80, %c0_81, %c0_82], %158 {strides = array<i32>} : memref<1x1x128xf32, #tpu.memory_space<vmem>>, vector<1x1x128xf32>,
    return
  }
  func.func @transform_0(%arg0: i32) -> (i32, i32) {
    %c0_i32 = arith.constant 0 : i32
    %c0_i32_0 = arith.constant 0 : i32
    return %arg0, %c0_i32 : i32, i32
  }
  func.func @transform_1(%arg0: i32) -> (i32, i32) {
    %c0_i32 = arith.constant 0 : i32
    %c0_i32_0 = arith.constant 0 : i32
    return %c0_i32, %arg0 : i32, i32
  }
  func.func @transform_2(%arg0: i32) -> (i32, i32) {
    %c0_i32 = arith.constant 0 : i32
    %c0_i32_0 = arith.constant 0 : i32
    %c0_i32_1 = arith.constant 0 : i32
    return %c0_i32, %c0_i32_0 : i32, i32
  }
  func.func @transform_3(%arg0: i32) -> (i32, i32, i32) {
    %c0_i32 = arith.constant 0 : i32
    %c0_i32_0 = arith.constant 0 : i32
    %c0_i32_1 = arith.constant 0 : i32
    %c0_i32_2 = arith.constant 0 : i32
    return %c0_i32, %c0_i32_0, %c0_i32_1 : i32, i32, i32
  }
  func.func @transform_4(%arg0: i32) -> (i32, i32) {
    %c0_i32 = arith.constant 0 : i32
    %c0_i32_0 = arith.constant 0 : i32
    %c0_i32_1 = arith.constant 0 : i32
    return %c0_i32, %c0_i32_0 : i32, i32
  }
  func.func @transform_5(%arg0: i32) -> (i32, i32) {
    %c0_i32 = arith.constant 0 : i32
    %c0_i32_0 = arith.constant 0 : i32
    %c0_i32_1 = arith.constant 0 : i32
    return %c0_i32, %c0_i32_0 : i32, i32
  }
  func.func @transform_6(%arg0: i32) -> (i32, i32) {
    %c0_i32 = arith.constant 0 : i32
    %c0_i32_0 = arith.constant 0 : i32
    %c0_i32_1 = arith.constant 0 : i32
    return %c0_i32, %c0_i32_0 : i32, i32
  }
  func.func @transform_7(%arg0: i32) -> (i32, i32) {
    %c0_i32 = arith.constant 0 : i32
    %c0_i32_0 = arith.constant 0 : i32
    %c0_i32_1 = arith.constant 0 : i32
    return %c0_i32, %c0_i32_0 : i32, i32
  }
  func.func @transform_8(%arg0: i32) -> (i32, i32) {
    %c0_i32 = arith.constant 0 : i32
    %c0_i32_0 = arith.constant 0 : i32
    %c0_i32_1 = arith.constant 0 : i32
    return %c0_i32, %c0_i32_0 : i32, i32
  }
  func.func @transform_9(%arg0: i32) -> (i32, i32) {
    %c0_i32 = arith.constant 0 : i32
    %c0_i32_0 = arith.constant 0 : i32
    %c0_i32_1 = arith.constant 0 : i32
    return %c0_i32, %c0_i32_0 : i32, i32
  }
  func.func @transform_10(%arg0: i32) -> (i32, i32) {
    %c0_i32 = arith.constant 0 : i32
    %c0_i32_0 = arith.constant 0 : i32
    %c0_i32_1 = arith.constant 0 : i32
    return %c0_i32, %c0_i32_0 : i32, i32
  }
  func.func @transform_11(%arg0: i32) -> (i32, i32) {
    %c0_i32 = arith.constant 0 : i32
    %c0_i32_0 = arith.constant 0 : i32
    %c0_i32_1 = arith.constant 0 : i32
    return %c0_i32, %c0_i32_0 : i32, i32
  }
  func.func @transform_12(%arg0: i32) -> (i32, i32, i32) {
    %c0_i32 = arith.constant 0 : i32
    %c0_i32_0 = arith.constant 0 : i32
    %c0_i32_1 = arith.constant 0 : i32
    return %arg0, %c0_i32, %c0_i32_0 : i32, i32, i32
  }
}

</mosaic_0001>

<llo_original>
// kernel: deepfm_forward.1
$region0: #{deepfm_forward.1}
  #allocation0 [shape = 'u32[]', space=smem, size = 0x4, offset = 0x4, fixed_abs, tag = 'smem constant byte address 0x4 - core index']
  #allocation1 [shape = 'u32[72,128]{1,0:T(1,128)}', space=vmem, size = 0x9000, scoped, tag = 'internal scratch']
  %s0 = inlined_call_operand.vmem [shape: s32[256,4], index: 0, kind: input, shape index: {}]
  %s1 = inlined_call_operand.vmem [shape: f32[2,256], index: 1, kind: input, shape index: {}]
  %s2 = inlined_call_operand.vmem [shape: bf16[128,128], index: 2, kind: input, shape index: {}]
  %s3 = inlined_call_operand.vmem [shape: bf16[4,128,128], index: 3, kind: input, shape index: {}]
  %s4 = inlined_call_operand.vmem [shape: f32[1,128], index: 4, kind: input, shape index: {}]
  %s5 = inlined_call_operand.vmem [shape: f32[1,128], index: 5, kind: input, shape index: {}]
  %s6 = inlined_call_operand.vmem [shape: f32[1,128], index: 6, kind: input, shape index: {}]
  %s7 = inlined_call_operand.vmem [shape: bf16[128,128], index: 7, kind: input, shape index: {}]
  %s8 = inlined_call_operand.vmem [shape: f32[1,128], index: 8, kind: input, shape index: {}]
  %s9 = inlined_call_operand.vmem [shape: f32[1,128], index: 9, kind: input, shape index: {}]
  %s10 = inlined_call_operand.vmem [shape: f32[1,128], index: 10, kind: input, shape index: {}]
  %s11 = inlined_call_operand.vmem [shape: f32[1,128], index: 11, kind: input, shape index: {}]
  %s12 = inlined_call_operand.vmem [shape: f32[2,1,128], index: 12, kind: output, shape index: {}]
  %s13 = sld [smem:[#allocation0]]
  $region81: #{deepfm_forward.1} parent=0
    _
  %s15 = ssub.s32 1, %s13
  %s16 = scalar_select 0, %s15, %s13
  loop: start=0, step=1, limit=4
  $region2: #{deepfm_forward.1} parent=0 // loop_pre_header
    _
  $region3: #{deepfm_forward.1} parent=0 // loop_header
    %s18 = sphi 0, %s22
    %p19 = scmp.ge.s32.totalorder %s18, 4
    %s28 = sphi 0, %s30
    %s31 = sphi 0, %s28
    %s32 = sphi 0, %s31
    %s48 = sphi 0, %s32
    %s54 = sphi 0, %s56
    %s57 = sphi 0, %s54
    %s58 = sphi 0, %s57
    %s74 = sphi 0, %s58
    %s78 = sphi 0, %s78
    %s80 = sphi 0, %s78
    %s81 = sphi 0, %s80
    %s95 = sphi 0, %s81
    %s99 = sphi 0, %s99
    %s101 = sphi 0, %s99
    %s102 = sphi 0, %s101
    %s116 = sphi 0, %s102
    %s120 = sphi 0, %s120
    %s122 = sphi 0, %s120
    %s123 = sphi 0, %s122
    %s137 = sphi 0, %s123
    %s141 = sphi 0, %s141
    %s143 = sphi 0, %s141
    %s144 = sphi 0, %s143
    %s158 = sphi 0, %s144
    %s162 = sphi 0, %s162
    %s164 = sphi 0, %s162
    %s165 = sphi 0, %s164
    %s179 = sphi 0, %s165
    %s183 = sphi 0, %s183
    %s185 = sphi 0, %s183
    %s186 = sphi 0, %s185
    %s200 = sphi 0, %s186
    %s204 = sphi 0, %s204
    %s206 = sphi 0, %s204
    %s207 = sphi 0, %s206
    %s221 = sphi 0, %s207
    %s225 = sphi 0, %s225
    %s227 = sphi 0, %s225
    %s228 = sphi 0, %s227
    %s242 = sphi 0, %s228
    %s246 = sphi 0, %s246
    %s248 = sphi 0, %s246
    %s249 = sphi 0, %s248
    %s263 = sphi 0, %s249
    %s267 = sphi 0, %s267
    %s269 = sphi 0, %s267
    %s270 = sphi 0, %s269
    %s284 = sphi 0, %s270
    %s290 = sphi 0, %s292
    %s293 = sphi 0, %s290
    %s294 = sphi 0, %s293
    %s310 = sphi 0, %s294
  $region4: #{deepfm_forward.1} parent=0 // loop_header_branch
    %21 = sbr.rel (%p19) target = $region8
  $region5: #{deepfm_forward.1} parent=0 // loop_body
    %s23 = ssub.s32 %s18, 1
    %s24 = ssub.s32 %s18, 2
    %s25 = sadd.s32 %s18, 1
    %s26 = ssub.s32 %s18, %s25
    %p27 = scmp.eq.s32.totalorder %s26, 0
    %s29 = sadd.s32 %s28, 1
    %s30 = scalar_select %p27, %s28, %s29
    %p33 = pneg %p27
    %p34 = scmp.eq.s32.totalorder %s18, 1
    %p35 = por %p33, %p34
    %p36 = scmp.ne.s32.totalorder %s28, %s31
    %p37 = scmp.eq.s32.totalorder %s18, 0
    %p38 = por %p36, %p37
    %p39 = scmp.ne.s32.totalorder %s28, %s31
    %p40 = scmp.eq.s32.totalorder %s23, 1
    %p41 = por %p39, %p40
    %p42 = scmp.ne.s32.totalorder %s31, %s32
    %p43 = scmp.eq.s32.totalorder %s23, 0
    %p44 = por %p42, %p43
    %p45 = scmp.ne.s32.totalorder %s31, %s32
    %p46 = scmp.eq.s32.totalorder %s24, 1
    %p47 = por %p45, %p46
    %p49 = scmp.ne.s32.totalorder %s32, %s48
    %p50 = scmp.eq.s32.totalorder %s24, 0
    %p51 = por %p49, %p50
    %s52 = ssub.s32 %s18, %s25
    %p53 = scmp.eq.s32.totalorder %s52, 0
    %s55 = sadd.s32 %s54, 1
    %s56 = scalar_select %p53, %s54, %s55
    %p59 = pneg %p53
    %p60 = scmp.eq.s32.totalorder %s18, 1
    %p61 = por %p59, %p60
    %p62 = scmp.ne.s32.totalorder %s54, %s57
    %p63 = scmp.eq.s32.totalorder %s18, 0
    %p64 = por %p62, %p63
    %p65 = scmp.ne.s32.totalorder %s54, %s57
    %p66 = scmp.eq.s32.totalorder %s23, 1
    %p67 = por %p65, %p66
    %p68 = scmp.ne.s32.totalorder %s57, %s58
    %p69 = scmp.eq.s32.totalorder %s23, 0
    %p70 = por %p68, %p69
    %p71 = scmp.ne.s32.totalorder %s57, %s58
    %p72 = scmp.eq.s32.totalorder %s24, 1
    %p73 = por %p71, %p72
    %p75 = scmp.ne.s32.totalorder %s58, %s74
    %p76 = scmp.eq.s32.totalorder %s24, 0
    %p77 = por %p75, %p76
    %s79 = sadd.s32 %s78, 1
    %p82 = scmp.eq.s32.totalorder %s18, 1
    %p83 = scmp.ne.s32.totalorder %s78, %s80
    %p84 = scmp.eq.s32.totalorder %s18, 0
    %p85 = por %p83, %p84
    %p86 = scmp.ne.s32.totalorder %s78, %s80
    %p87 = scmp.eq.s32.totalorder %s23, 1
    %p88 = por %p86, %p87
    %p89 = scmp.ne.s32.totalorder %s80, %s81
    %p90 = scmp.eq.s32.totalorder %s23, 0
    %p91 = por %p89, %p90
    %p92 = scmp.ne.s32.totalorder %s80, %s81
    %p93 = scmp.eq.s32.totalorder %s24, 1
    %p94 = por %p92, %p93
    %p96 = scmp.ne.s32.totalorder %s81, %s95
    %p97 = scmp.eq.s32.totalorder %s24, 0
    %p98 = por %p96, %p97
    %s100 = sadd.s32 %s99, 1
    %p103 = scmp.eq.s32.totalorder %s18, 1
    %p104 = scmp.ne.s32.totalorder %s99, %s101
    %p105 = scmp.eq.s32.totalorder %s18, 0
    %p106 = por %p104, %p105
    %p107 = scmp.ne.s32.totalorder %s99, %s101
    %p108 = scmp.eq.s32.totalorder %s23, 1
    %p109 = por %p107, %p108
    %p110 = scmp.ne.s32.totalorder %s101, %s102
    %p111 = scmp.eq.s32.totalorder %s23, 0
    %p112 = por %p110, %p111
    %p113 = scmp.ne.s32.totalorder %s101, %s102
    %p114 = scmp.eq.s32.totalorder %s24, 1
    %p115 = por %p113, %p114
    %p117 = scmp.ne.s32.totalorder %s102, %s116
    %p118 = scmp.eq.s32.totalorder %s24, 0
    %p119 = por %p117, %p118
    %s121 = sadd.s32 %s120, 1
    %p124 = scmp.eq.s32.totalorder %s18, 1
    %p125 = scmp.ne.s32.totalorder %s120, %s122
    %p126 = scmp.eq.s32.totalorder %s18, 0
    %p127 = por %p125, %p126
    %p128 = scmp.ne.s32.totalorder %s120, %s122
    %p129 = scmp.eq.s32.totalorder %s23, 1
    %p130 = por %p128, %p129
    %p131 = scmp.ne.s32.totalorder %s122, %s123
    %p132 = scmp.eq.s32.totalorder %s23, 0
    %p133 = por %p131, %p132
    %p134 = scmp.ne.s32.totalorder %s122, %s123
    %p135 = scmp.eq.s32.totalorder %s24, 1
    %p136 = por %p134, %p135
    %p138 = scmp.ne.s32.totalorder %s123, %s137
    %p139 = scmp.eq.s32.totalorder %s24, 0
    %p140 = por %p138, %p139
    %s142 = sadd.s32 %s141, 1
    %p145 = scmp.eq.s32.totalorder %s18, 1
    %p146 = scmp.ne.s32.totalorder %s141, %s143
    %p147 = scmp.eq.s32.totalorder %s18, 0
    %p148 = por %p146, %p147
    %p149 = scmp.ne.s32.totalorder %s141, %s143
    %p150 = scmp.eq.s32.totalorder %s23, 1
    %p151 = por %p149, %p150
    %p152 = scmp.ne.s32.totalorder %s143, %s144
    %p153 = scmp.eq.s32.totalorder %s23, 0
    %p154 = por %p152, %p153
    %p155 = scmp.ne.s32.totalorder %s143, %s144
    %p156 = scmp.eq.s32.totalorder %s24, 1
    %p157 = por %p155, %p156
    %p159 = scmp.ne.s32.totalorder %s144, %s158
    %p160 = scmp.eq.s32.totalorder %s24, 0
    %p161 = por %p159, %p160
    %s163 = sadd.s32 %s162, 1
    %p166 = scmp.eq.s32.totalorder %s18, 1
    %p167 = scmp.ne.s32.totalorder %s162, %s164
    %p168 = scmp.eq.s32.totalorder %s18, 0
    %p169 = por %p167, %p168
    %p170 = scmp.ne.s32.totalorder %s162, %s164
    %p171 = scmp.eq.s32.totalorder %s23, 1
    %p172 = por %p170, %p171
    %p173 = scmp.ne.s32.totalorder %s164, %s165
    %p174 = scmp.eq.s32.totalorder %s23, 0
    %p175 = por %p173, %p174
    %p176 = scmp.ne.s32.totalorder %s164, %s165
    %p177 = scmp.eq.s32.totalorder %s24, 1
    %p178 = por %p176, %p177
    %p180 = scmp.ne.s32.totalorder %s165, %s179
    %p181 = scmp.eq.s32.totalorder %s24, 0
    %p182 = por %p180, %p181
    %s184 = sadd.s32 %s183, 1
    %p187 = scmp.eq.s32.totalorder %s18, 1
    %p188 = scmp.ne.s32.totalorder %s183, %s185
    %p189 = scmp.eq.s32.totalorder %s18, 0
    %p190 = por %p188, %p189
    %p191 = scmp.ne.s32.totalorder %s183, %s185
    %p192 = scmp.eq.s32.totalorder %s23, 1
    %p193 = por %p191, %p192
    %p194 = scmp.ne.s32.totalorder %s185, %s186
    %p195 = scmp.eq.s32.totalorder %s23, 0
    %p196 = por %p194, %p195
    %p197 = scmp.ne.s32.totalorder %s185, %s186
    %p198 = scmp.eq.s32.totalorder %s24, 1
    %p199 = por %p197, %p198
    %p201 = scmp.ne.s32.totalorder %s186, %s200
    %p202 = scmp.eq.s32.totalorder %s24, 0
    %p203 = por %p201, %p202
    %s205 = sadd.s32 %s204, 1
    %p208 = scmp.eq.s32.totalorder %s18, 1
    %p209 = scmp.ne.s32.totalorder %s204, %s206
    %p210 = scmp.eq.s32.totalorder %s18, 0
    %p211 = por %p209, %p210
    %p212 = scmp.ne.s32.totalorder %s204, %s206
    %p213 = scmp.eq.s32.totalorder %s23, 1
    %p214 = por %p212, %p213
    %p215 = scmp.ne.s32.totalorder %s206, %s207
    %p216 = scmp.eq.s32.totalorder %s23, 0
    %p217 = por %p215, %p216
    %p218 = scmp.ne.s32.totalorder %s206, %s207
    %p219 = scmp.eq.s32.totalorder %s24, 1
    %p220 = por %p218, %p219
    %p222 = scmp.ne.s32.totalorder %s207, %s221
    %p223 = scmp.eq.s32.totalorder %s24, 0
    %p224 = por %p222, %p223
    %s226 = sadd.s32 %s225, 1
    %p229 = scmp.eq.s32.totalorder %s18, 1
    %p230 = scmp.ne.s32.totalorder %s225, %s227
    %p231 = scmp.eq.s32.totalorder %s18, 0
    %p232 = por %p230, %p231
    %p233 = scmp.ne.s32.totalorder %s225, %s227
    %p234 = scmp.eq.s32.totalorder %s23, 1
    %p235 = por %p233, %p234
    %p236 = scmp.ne.s32.totalorder %s227, %s228
    %p237 = scmp.eq.s32.totalorder %s23, 0
    %p238 = por %p236, %p237
    %p239 = scmp.ne.s32.totalorder %s227, %s228
    %p240 = scmp.eq.s32.totalorder %s24, 1
    %p241 = por %p239, %p240
    %p243 = scmp.ne.s32.totalorder %s228, %s242
    %p244 = scmp.eq.s32.totalorder %s24, 0
    %p245 = por %p243, %p244
    %s247 = sadd.s32 %s246, 1
    %p250 = scmp.eq.s32.totalorder %s18, 1
    %p251 = scmp.ne.s32.totalorder %s246, %s248
    %p252 = scmp.eq.s32.totalorder %s18, 0
    %p253 = por %p251, %p252
    %p254 = scmp.ne.s32.totalorder %s246, %s248
    %p255 = scmp.eq.s32.totalorder %s23, 1
    %p256 = por %p254, %p255
    %p257 = scmp.ne.s32.totalorder %s248, %s249
    %p258 = scmp.eq.s32.totalorder %s23, 0
    %p259 = por %p257, %p258
    %p260 = scmp.ne.s32.totalorder %s248, %s249
    %p261 = scmp.eq.s32.totalorder %s24, 1
    %p262 = por %p260, %p261
    %p264 = scmp.ne.s32.totalorder %s249, %s263
    %p265 = scmp.eq.s32.totalorder %s24, 0
    %p266 = por %p264, %p265
    %s268 = sadd.s32 %s267, 1
    %p271 = scmp.eq.s32.totalorder %s18, 1
    %p272 = scmp.ne.s32.totalorder %s267, %s269
    %p273 = scmp.eq.s32.totalorder %s18, 0
    %p274 = por %p272, %p273
    %p275 = scmp.ne.s32.totalorder %s267, %s269
    %p276 = scmp.eq.s32.totalorder %s23, 1
    %p277 = por %p275, %p276
    %p278 = scmp.ne.s32.totalorder %s269, %s270
    %p279 = scmp.eq.s32.totalorder %s23, 0
    %p280 = por %p278, %p279
    %p281 = scmp.ne.s32.totalorder %s269, %s270
    %p282 = scmp.eq.s32.totalorder %s24, 1
    %p283 = por %p281, %p282
    %p285 = scmp.ne.s32.totalorder %s270, %s284
    %p286 = scmp.eq.s32.totalorder %s24, 0
    %p287 = por %p285, %p286
    %s288 = ssub.s32 %s18, %s25
    %p289 = scmp.eq.s32.totalorder %s288, 0
    %s291 = sadd.s32 %s290, 1
    %s292 = scalar_select %p289, %s290, %s291
    %p295 = pneg %p289
    %p296 = scmp.eq.s32.totalorder %s18, 1
    %p297 = por %p295, %p296
    %p298 = scmp.ne.s32.totalorder %s290, %s293
    %p299 = scmp.eq.s32.totalorder %s18, 0
    %p300 = por %p298, %p299
    %p301 = scmp.ne.s32.totalorder %s290, %s293
    %p302 = scmp.eq.s32.totalorder %s23, 1
    %p303 = por %p301, %p302
    %p304 = scmp.ne.s32.totalorder %s293, %s294
    %p305 = scmp.eq.s32.totalorder %s23, 0
    %p306 = por %p304, %p305
    %p307 = scmp.ne.s32.totalorder %s293, %s294
    %p308 = scmp.eq.s32.totalorder %s24, 1
    %p309 = por %p307, %p308
    %p311 = scmp.ne.s32.totalorder %s294, %s310
    %p312 = scmp.eq.s32.totalorder %s24, 0
    %p313 = por %p311, %p312
    %p314 = scmp.le.s32.totalorder 1, %s18
    %p315 = scmp.lt.s32.totalorder %s18, 3
    %p316 = pnand %p314, %p315
    %p317 = pneg %p316
    // Predicated region
    $region9: #{deepfm_forward.1} parent=5 // pred_check
      _
    $region10: #{deepfm_forward.1} parent=5 // pred_check_branch
      %319 = sbr.rel (%p316) target = $region12
    $region11: #{deepfm_forward.1} parent=5 // pred_region
      %s320 = ssub.s32 %s18, 1
      // Predicated region
      $region13: #{deepfm_forward.1} parent=11 // pred_check
        %p321 = pneg %p91
      $region14: #{deepfm_forward.1} parent=11 // pred_check_branch
        %323 = sbr.rel (%p321) target = $region16
      $region15: #{deepfm_forward.1} parent=11 // pred_region
        _
      $region16: #{deepfm_forward.1} parent=11 // pred_fallthru
        _
      // Predicated region
      $region17: #{deepfm_forward.1} parent=11 // pred_check
        %p324 = pneg %p112
      $region18: #{deepfm_forward.1} parent=11 // pred_check_branch
        %326 = sbr.rel (%p324) target = $region20
      $region19: #{deepfm_forward.1} parent=11 // pred_region
        _
      $region20: #{deepfm_forward.1} parent=11 // pred_fallthru
        _
      // Predicated region
      $region21: #{deepfm_forward.1} parent=11 // pred_check
        %p327 = pneg %p133
      $region22: #{deepfm_forward.1} parent=11 // pred_check_branch
        %329 = sbr.rel (%p327) target = $region24
      $region23: #{deepfm_forward.1} parent=11 // pred_region
        _
      $region24: #{deepfm_forward.1} parent=11 // pred_fallthru
        _
      // Predicated region
      $region25: #{deepfm_forward.1} parent=11 // pred_check
        %p330 = pneg %p154
      $region26: #{deepfm_forward.1} parent=11 // pred_check_branch
        %332 = sbr.rel (%p330) target = $region28
      $region27: #{deepfm_forward.1} parent=11 // pred_region
        _
      $region28: #{deepfm_forward.1} parent=11 // pred_fallthru
        _
      // Predicated region
      $region29: #{deepfm_forward.1} parent=11 // pred_check
        %p333 = pneg %p175
      $region30: #{deepfm_forward.1} parent=11 // pred_check_branch
        %335 = sbr.rel (%p333) target = $region32
      $region31: #{deepfm_forward.1} parent=11 // pred_region
        _
      $region32: #{deepfm_forward.1} parent=11 // pred_fallthru
        _
      // Predicated region
      $region33: #{deepfm_forward.1} parent=11 // pred_check
        %p336 = pneg %p196
      $region34: #{deepfm_forward.1} parent=11 // pred_check_branch
        %338 = sbr.rel (%p336) target = $region36
      $region35: #{deepfm_forward.1} parent=11 // pred_region
        _
      $region36: #{deepfm_forward.1} parent=11 // pred_fallthru
        _
      // Predicated region
      $region37: #{deepfm_forward.1} parent=11 // pred_check
        %p339 = pneg %p217
      $region38: #{deepfm_forward.1} parent=11 // pred_check_branch
        %341 = sbr.rel (%p339) target = $region40
      $region39: #{deepfm_forward.1} parent=11 // pred_region
        _
      $region40: #{deepfm_forward.1} parent=11 // pred_fallthru
        _
      // Predicated region
      $region41: #{deepfm_forward.1} parent=11 // pred_check
        %p342 = pneg %p238
      $region42: #{deepfm_forward.1} parent=11 // pred_check_branch
        %344 = sbr.rel (%p342) target = $region44
      $region43: #{deepfm_forward.1} parent=11 // pred_region
        _
      $region44: #{deepfm_forward.1} parent=11 // pred_fallthru
        _
      // Predicated region
      $region45: #{deepfm_forward.1} parent=11 // pred_check
        %p345 = pneg %p259
      $region46: #{deepfm_forward.1} parent=11 // pred_check_branch
        %347 = sbr.rel (%p345) target = $region48
      $region47: #{deepfm_forward.1} parent=11 // pred_region
        _
      $region48: #{deepfm_forward.1} parent=11 // pred_fallthru
        _
      // Predicated region
      $region49: #{deepfm_forward.1} parent=11 // pred_check
        %p348 = pneg %p280
      $region50: #{deepfm_forward.1} parent=11 // pred_check_branch
        %350 = sbr.rel (%p348) target = $region52
      $region51: #{deepfm_forward.1} parent=11 // pred_region
        _
      $region52: #{deepfm_forward.1} parent=11 // pred_fallthru
        _
    $region12: #{deepfm_forward.1} parent=5 // pred_fallthru
      _
    %p351 = scmp.lt.s32.totalorder %s18, 2
    // Predicated region
    $region53: #{deepfm_forward.1} parent=5 // pred_check
      %p352 = pneg %p351
    $region54: #{deepfm_forward.1} parent=5 // pred_check_branch
      %354 = sbr.rel (%p352) target = $region56
    $region55: #{deepfm_forward.1} parent=5 // pred_region
      // Predicated region
      $region57: #{deepfm_forward.1} parent=55 // pred_check
        %p355 = pneg %p38
      $region58: #{deepfm_forward.1} parent=55 // pred_check_branch
        %357 = sbr.rel (%p355) target = $region60
      $region59: #{deepfm_forward.1} parent=55 // pred_region
        %s358 = smul.u32 16, %s18
        %p359 = scmp.lt.s32.totalorder %s358, 31
        %s360 = scalar_select %p359, %s358, 31
        %s361 = smul.addr %s360, 8
        %s362 = scalar_lea.vmem %s0, %s361
        %s363 = smul.u32 16, %s18
      $region60: #{deepfm_forward.1} parent=55 // pred_fallthru
        _
      // Predicated region
      $region61: #{deepfm_forward.1} parent=55 // pred_check
        %p364 = pneg %p64
      $region62: #{deepfm_forward.1} parent=55 // pred_check_branch
        %366 = sbr.rel (%p364) target = $region64
      $region63: #{deepfm_forward.1} parent=55 // pred_region
        %p367 = scmp.lt.s32.totalorder %s18, 1
        %s368 = scalar_select %p367, %s18, 1
        %s369 = smul.addr %s368, 2
        %s370 = scalar_lea.vmem %s1, %s369
      $region64: #{deepfm_forward.1} parent=55 // pred_fallthru
        _
    $region56: #{deepfm_forward.1} parent=5 // pred_fallthru
      _
    %p371 = scmp.le.s32.totalorder 1, %s18
    %p372 = scmp.lt.s32.totalorder %s18, 3
    %p373 = pnand %p371, %p372
    %p374 = pneg %p373
    // Predicated region
    $region65: #{deepfm_forward.1} parent=5 // pred_check
      _
    $region66: #{deepfm_forward.1} parent=5 // pred_check_branch
      %376 = sbr.rel (%p373) target = $region68
    $region67: #{deepfm_forward.1} parent=5 // pred_region
      %s377 = ssub.s32 %s18, 1
      %s378 = smul.u32 16, %s23
      %p379 = scmp.lt.s32.totalorder %s378, 31
      %s380 = scalar_select %p379, %s378, 31
      %s381 = smul.addr %s380, 8
      %s382 = scalar_lea.vmem %s0, %s381
      %p383 = pneg %p44
      %p384 = pneg %p41
      %p385 = scmp.lt.s32.totalorder %s23, 1
      %s386 = scalar_select %p385, %s23, 1
      %s387 = smul.addr %s386, 2
      %s388 = scalar_lea.vmem %s1, %s387
      %p389 = pneg %p70
      %p390 = pneg %p67
      %p391 = pneg %p91
      %p392 = pneg %p88
      %p393 = pneg %p112
      %p394 = pneg %p109
      %p395 = pneg %p133
      %p396 = pneg %p130
      %p397 = pneg %p154
      %p398 = pneg %p151
      %p399 = pneg %p175
      %p400 = pneg %p172
      %p401 = pneg %p196
      %p402 = pneg %p193
      %p403 = pneg %p217
      %p404 = pneg %p214
      %p405 = pneg %p238
      %p406 = pneg %p235
      %p407 = pneg %p259
      %p408 = pneg %p256
      %p409 = pneg %p280
      %p410 = pneg %p277
      %p411 = pneg %p306
      %p412 = pneg %p303
      %p413 = scmp.lt.s32.totalorder %s23, 1
      %s414 = scalar_select %p413, %s23, 1
      %s415 = scalar_lea.vmem %s12, %s414
      %s416 = smul.u32 16, %s23
      %p417 = scmp.lt.s32.totalorder %s416, 31
      %s418 = scalar_select %p417, %s416, 31
      %s419 = smul.addr %s418, 8
      %s420 = scalar_lea.vmem %s0, %s419
      %s421 = smul.u32 16, %s23
      %p422 = scmp.lt.s32.totalorder %s23, 1
      %s423 = scalar_select %p422, %s23, 1
      %s424 = smul.addr %s423, 2
      %s425 = scalar_lea.vmem %s1, %s424
      %p426 = scmp.lt.s32.totalorder %s23, 1
      %s427 = scalar_select %p426, %s23, 1
      %s428 = scalar_lea.vmem %s12, %s427
      %v429 = vlaneseq
      %v430 = vand.u32 %v429, 127
      %v431 = vld [vmem:[%s2] sm:$0xf]
      %v432 = vld [vmem:[%s2 + $0x4] sm:$0xf]
      %v433 = vld [vmem:[%s2 + $0x8] sm:$0xf]
      %v434 = vld [vmem:[%s2 + $0xc] sm:$0xf]
      %v435 = vld [vmem:[%s2 + $0x10] sm:$0xf]
      %v436 = vld [vmem:[%s2 + $0x14] sm:$0xf]
      %v437 = vld [vmem:[%s2 + $0x18] sm:$0xf]
      %v438 = vld [vmem:[%s2 + $0x1c] sm:$0xf]
      %v439 = vld [vmem:[%s2 + $0x20] sm:$0xf]
      %v440 = vld [vmem:[%s2 + $0x24] sm:$0xf]
      %v441 = vld [vmem:[%s2 + $0x28] sm:$0xf]
      %v442 = vld [vmem:[%s2 + $0x2c] sm:$0xf]
      %v443 = vld [vmem:[%s2 + $0x30] sm:$0xf]
      %v444 = vld [vmem:[%s2 + $0x34] sm:$0xf]
      %v445 = vld [vmem:[%s2 + $0x38] sm:$0xf]
      %v446 = vld [vmem:[%s2 + $0x3c] sm:$0xf]
      %v447 = vld [vmem:[%s420] sm:$0xff]
      %v448 = vld [vmem:[%s420 + $0x8] sm:$0xff]
      %v449 = vld [vmem:[%s420 + $0x10] sm:$0xff]
      %v450 = vld [vmem:[%s420 + $0x18] sm:$0xff]
      %v451 = vld [vmem:[%s420 + $0x20] sm:$0xff]
      %v452 = vld [vmem:[%s420 + $0x28] sm:$0xff]
      %v453 = vld [vmem:[%s420 + $0x30] sm:$0xff]
      %v454 = vld [vmem:[%s420 + $0x38] sm:$0xff]
      %v455 = vld [vmem:[%s420 + $0x40] sm:$0xff]
      %v456 = vld [vmem:[%s420 + $0x48] sm:$0xff]
      %v457 = vld [vmem:[%s420 + $0x50] sm:$0xff]
      %v458 = vld [vmem:[%s420 + $0x58] sm:$0xff]
      %v459 = vld [vmem:[%s420 + $0x60] sm:$0xff]
      %v460 = vld [vmem:[%s420 + $0x68] sm:$0xff]
      %v461 = vld [vmem:[%s420 + $0x70] sm:$0xff]
      %v462 = vld [vmem:[%s420 + $0x78] sm:$0xff]
      %463 = vset.pattern.permute.xlu0 0
      %464 = vperm.xlu0 %463, %v447
      %v465 = vpop.permute.xlu0 %464
      %466 = vset.pattern.permute.xlu0 0
      %467 = vperm.xlu0 %466, %v448
      %v468 = vpop.permute.xlu0 %467
      %469 = vset.pattern.permute.xlu0 0
      %470 = vperm.xlu0 %469, %v449
      %v471 = vpop.permute.xlu0 %470
      %472 = vset.pattern.permute.xlu0 0
      %473 = vperm.xlu0 %472, %v450
      %v474 = vpop.permute.xlu0 %473
      %475 = vset.pattern.permute.xlu0 0
      %476 = vperm.xlu0 %475, %v451
      %v477 = vpop.permute.xlu0 %476
      %478 = vset.pattern.permute.xlu0 0
      %479 = vperm.xlu0 %478, %v452
      %v480 = vpop.permute.xlu0 %479
      %481 = vset.pattern.permute.xlu0 0
      %482 = vperm.xlu0 %481, %v453
      %v483 = vpop.permute.xlu0 %482
      %484 = vset.pattern.permute.xlu0 0
      %485 = vperm.xlu0 %484, %v454
      %v486 = vpop.permute.xlu0 %485
      %487 = vset.pattern.permute.xlu0 0
      %488 = vperm.xlu0 %487, %v455
      %v489 = vpop.permute.xlu0 %488
      %490 = vset.pattern.permute.xlu0 0
      %491 = vperm.xlu0 %490, %v456
      %v492 = vpop.permute.xlu0 %491
      %493 = vset.pattern.permute.xlu0 0
      %494 = vperm.xlu0 %493, %v457
      %v495 = vpop.permute.xlu0 %494
      %496 = vset.pattern.permute.xlu0 0
      %497 = vperm.xlu0 %496, %v458
      %v498 = vpop.permute.xlu0 %497
      %499 = vset.pattern.permute.xlu0 0
      %500 = vperm.xlu0 %499, %v459
      %v501 = vpop.permute.xlu0 %500
      %502 = vset.pattern.permute.xlu0 0
      %503 = vperm.xlu0 %502, %v460
      %v504 = vpop.permute.xlu0 %503
      %505 = vset.pattern.permute.xlu0 0
      %506 = vperm.xlu0 %505, %v461
      %v507 = vpop.permute.xlu0 %506
      %508 = vset.pattern.permute.xlu0 0
      %509 = vperm.xlu0 %508, %v462
      %v510 = vpop.permute.xlu0 %509
      %vm511 = vcmp.eq.s32.totalorder %v430, %v465
      %vm512 = vcmp.eq.s32.totalorder %v430, %v468
      %vm513 = vcmp.eq.s32.totalorder %v430, %v471
      %vm514 = vcmp.eq.s32.totalorder %v430, %v474
      %vm515 = vcmp.eq.s32.totalorder %v430, %v477
      %vm516 = vcmp.eq.s32.totalorder %v430, %v480
      %vm517 = vcmp.eq.s32.totalorder %v430, %v483
      %vm518 = vcmp.eq.s32.totalorder %v430, %v486
      %vm519 = vcmp.eq.s32.totalorder %v430, %v489
      %vm520 = vcmp.eq.s32.totalorder %v430, %v492
      %vm521 = vcmp.eq.s32.totalorder %v430, %v495
      %vm522 = vcmp.eq.s32.totalorder %v430, %v498
      %vm523 = vcmp.eq.s32.totalorder %v430, %v501
      %vm524 = vcmp.eq.s32.totalorder %v430, %v504
      %vm525 = vcmp.eq.s32.totalorder %v430, %v507
      %vm526 = vcmp.eq.s32.totalorder %v430, %v510
      %v527 = vsel %vm511, 1.0, 0.0
      %v528 = vsel %vm512, 1.0, 0.0
      %v529 = vsel %vm513, 1.0, 0.0
      %v530 = vsel %vm514, 1.0, 0.0
      %v531 = vsel %vm515, 1.0, 0.0
      %v532 = vsel %vm516, 1.0, 0.0
      %v533 = vsel %vm517, 1.0, 0.0
      %v534 = vsel %vm518, 1.0, 0.0
      %v535 = vsel %vm519, 1.0, 0.0
      %v536 = vsel %vm520, 1.0, 0.0
      %v537 = vsel %vm521, 1.0, 0.0
      %v538 = vsel %vm522, 1.0, 0.0
      %v539 = vsel %vm523, 1.0, 0.0
      %v540 = vsel %vm524, 1.0, 0.0
      %v541 = vsel %vm525, 1.0, 0.0
      %v542 = vsel %vm526, 1.0, 0.0
      %v543 = vpack.c.bf16 %v528, %v527
      %v544 = vpack.c.bf16 %v530, %v529
      %v545 = vpack.c.bf16 %v532, %v531
      %v546 = vpack.c.bf16 %v534, %v533
      %v547 = vpack.c.bf16 %v536, %v535
      %v548 = vpack.c.bf16 %v538, %v537
      %v549 = vpack.c.bf16 %v540, %v539
      %v550 = vpack.c.bf16 %v542, %v541
      %v567 = vunpack.c.l.b16 %v431
      %v568 = vunpack.c.l.b16 %v432
      %v569 = vunpack.c.l.b16 %v433
      %v570 = vunpack.c.l.b16 %v434
      %v571 = vunpack.c.l.b16 %v435
      %v572 = vunpack.c.l.b16 %v436
      %v573 = vunpack.c.l.b16 %v437
      %v574 = vunpack.c.l.b16 %v438
      %v575 = vunpack.c.l.b16 %v439
      %v576 = vunpack.c.l.b16 %v440
      %v577 = vunpack.c.l.b16 %v441
      %v578 = vunpack.c.l.b16 %v442
      %v579 = vunpack.c.l.b16 %v443
      %v580 = vunpack.c.l.b16 %v444
      %v581 = vunpack.c.l.b16 %v445
      %v582 = vunpack.c.l.b16 %v446
      %v583 = vpack.c.b16 %v568, %v567
      %v584 = vpack.c.b16 %v570, %v569
      %v585 = vpack.c.b16 %v572, %v571
      %v586 = vpack.c.b16 %v574, %v573
      %v587 = vpack.c.b16 %v576, %v575
      %v588 = vpack.c.b16 %v578, %v577
      %v589 = vpack.c.b16 %v580, %v579
      %v590 = vpack.c.b16 %v582, %v581
      %599 = vmatpush.bf16.msra.mxu0 %v590
      %600 = vmatpush.bf16.msra.mxu0 %v589
      %601 = vmatpush.bf16.msra.mxu0 %v588
      %602 = vmatpush.bf16.msra.mxu0 %v587
      %603 = vmatpush.bf16.msra.mxu0 %v586
      %604 = vmatpush.bf16.msra.mxu0 %v585
      %605 = vmatpush.bf16.msra.mxu0 %v584
      %606 = vmatpush.bf16.msra.mxu0 %v583
      %607 = vmatmul.bf16.gmra.mxu0 %v543
      %v608 = vpop.f32.mrf.mxu0
      %v609 = vadd.f32 0.0, %v608
      %v610 = vpop.f32.mrf.mxu0
      %v611 = vadd.f32 0.0, %v610
      %612 = vmatmul.bf16.gmra.mxu0 %v544
      %v613 = vpop.f32.mrf.mxu0
      %v614 = vadd.f32 0.0, %v613
      %v615 = vpop.f32.mrf.mxu0
      %v616 = vadd.f32 0.0, %v615
      %617 = vmatmul.bf16.gmra.mxu0 %v545
      %v618 = vpop.f32.mrf.mxu0
      %v619 = vadd.f32 0.0, %v618
      %v620 = vpop.f32.mrf.mxu0
      %v621 = vadd.f32 0.0, %v620
      %622 = vmatmul.bf16.gmra.mxu0 %v546
      %v623 = vpop.f32.mrf.mxu0
      %v624 = vadd.f32 0.0, %v623
      %v625 = vpop.f32.mrf.mxu0
      %v626 = vadd.f32 0.0, %v625
      %627 = vmatmul.bf16.gmra.mxu0 %v547
      %v628 = vpop.f32.mrf.mxu0
      %v629 = vadd.f32 0.0, %v628
      %v630 = vpop.f32.mrf.mxu0
      %v631 = vadd.f32 0.0, %v630
      %632 = vmatmul.bf16.gmra.mxu0 %v548
      %v633 = vpop.f32.mrf.mxu0
      %v634 = vadd.f32 0.0, %v633
      %v635 = vpop.f32.mrf.mxu0
      %v636 = vadd.f32 0.0, %v635
      %637 = vmatmul.bf16.gmra.mxu0 %v549
      %v638 = vpop.f32.mrf.mxu0
      %v639 = vadd.f32 0.0, %v638
      %v640 = vpop.f32.mrf.mxu0
      %v641 = vadd.f32 0.0, %v640
      %642 = vmatmul.bf16.gmra.mxu0 %v550
      %v643 = vpop.f32.mrf.mxu0
      %v644 = vadd.f32 0.0, %v643
      %v645 = vpop.f32.mrf.mxu0
      %v646 = vadd.f32 0.0, %v645
      %647 = vdwg.mxu0
      %v648 = vadd.f32 %v609, 0.0
      %v649 = vadd.f32 %v611, 0.0
      %v650 = vadd.f32 %v614, 0.0
      %v651 = vadd.f32 %v616, 0.0
      %v652 = vadd.f32 %v619, 0.0
      %v653 = vadd.f32 %v621, 0.0
      %v654 = vadd.f32 %v624, 0.0
      %v655 = vadd.f32 %v626, 0.0
      %v656 = vadd.f32 %v629, 0.0
      %v657 = vadd.f32 %v631, 0.0
      %v658 = vadd.f32 %v634, 0.0
      %v659 = vadd.f32 %v636, 0.0
      %v660 = vadd.f32 %v639, 0.0
      %v661 = vadd.f32 %v641, 0.0
      %v662 = vadd.f32 %v644, 0.0
      %v663 = vadd.f32 %v646, 0.0
      %v664 = vmul.f32 %v609, %v609
      %v665 = vmul.f32 %v611, %v611
      %v666 = vmul.f32 %v614, %v614
      %v667 = vmul.f32 %v616, %v616
      %v668 = vmul.f32 %v619, %v619
      %v669 = vmul.f32 %v621, %v621
      %v670 = vmul.f32 %v624, %v624
      %v671 = vmul.f32 %v626, %v626
      %v672 = vmul.f32 %v629, %v629
      %v673 = vmul.f32 %v631, %v631
      %v674 = vmul.f32 %v634, %v634
      %v675 = vmul.f32 %v636, %v636
      %v676 = vmul.f32 %v639, %v639
      %v677 = vmul.f32 %v641, %v641
      %v678 = vmul.f32 %v644, %v644
      %v679 = vmul.f32 %v646, %v646
      %v680 = vadd.f32 %v664, 0.0
      %v681 = vadd.f32 %v665, 0.0
      %v682 = vadd.f32 %v666, 0.0
      %v683 = vadd.f32 %v667, 0.0
      %v684 = vadd.f32 %v668, 0.0
      %v685 = vadd.f32 %v669, 0.0
      %v686 = vadd.f32 %v670, 0.0
      %v687 = vadd.f32 %v671, 0.0
      %v688 = vadd.f32 %v672, 0.0
      %v689 = vadd.f32 %v673, 0.0
      %v690 = vadd.f32 %v674, 0.0
      %v691 = vadd.f32 %v675, 0.0
      %v692 = vadd.f32 %v676, 0.0
      %v693 = vadd.f32 %v677, 0.0
      %v694 = vadd.f32 %v678, 0.0
      %v695 = vadd.f32 %v679, 0.0
      %v696 = vpack.c.bf16 %v611, %v609
      %v697 = vpack.c.bf16 %v616, %v614
      %v698 = vpack.c.bf16 %v621, %v619
      %v699 = vpack.c.bf16 %v626, %v624
      %v700 = vpack.c.bf16 %v631, %v629
      %v701 = vpack.c.bf16 %v636, %v634
      %v702 = vpack.c.bf16 %v641, %v639
      %v703 = vpack.c.bf16 %v646, %v644
      %v704 = vld [vmem:[%s3] sm:$0xf]
      %v705 = vld [vmem:[%s3 + $0x4] sm:$0xf]
      %v706 = vld [vmem:[%s3 + $0x8] sm:$0xf]
      %v707 = vld [vmem:[%s3 + $0xc] sm:$0xf]
      %v708 = vld [vmem:[%s3 + $0x10] sm:$0xf]
      %v709 = vld [vmem:[%s3 + $0x14] sm:$0xf]
      %v710 = vld [vmem:[%s3 + $0x18] sm:$0xf]
      %v711 = vld [vmem:[%s3 + $0x1c] sm:$0xf]
      %v712 = vld [vmem:[%s3 + $0x20] sm:$0xf]
      %v713 = vld [vmem:[%s3 + $0x24] sm:$0xf]
      %v714 = vld [vmem:[%s3 + $0x28] sm:$0xf]
      %v715 = vld [vmem:[%s3 + $0x2c] sm:$0xf]
      %v716 = vld [vmem:[%s3 + $0x30] sm:$0xf]
      %v717 = vld [vmem:[%s3 + $0x34] sm:$0xf]
      %v718 = vld [vmem:[%s3 + $0x38] sm:$0xf]
      %v719 = vld [vmem:[%s3 + $0x3c] sm:$0xf]
      %720 = vset.pattern.permute.xlu0 1
      %721 = vperm.xlu0 %720, %v447
      %v722 = vpop.permute.xlu0 %721
      %723 = vset.pattern.permute.xlu0 1
      %724 = vperm.xlu0 %723, %v448
      %v725 = vpop.permute.xlu0 %724
      %726 = vset.pattern.permute.xlu0 1
      %727 = vperm.xlu0 %726, %v449
      %v728 = vpop.permute.xlu0 %727
      %729 = vset.pattern.permute.xlu0 1
      %730 = vperm.xlu0 %729, %v450
      %v731 = vpop.permute.xlu0 %730
      %732 = vset.pattern.permute.xlu0 1
      %733 = vperm.xlu0 %732, %v451
      %v734 = vpop.permute.xlu0 %733
      %735 = vset.pattern.permute.xlu0 1
      %736 = vperm.xlu0 %735, %v452
      %v737 = vpop.permute.xlu0 %736
      %738 = vset.pattern.permute.xlu0 1
      %739 = vperm.xlu0 %738, %v453
      %v740 = vpop.permute.xlu0 %739
      %741 = vset.pattern.permute.xlu0 1
      %742 = vperm.xlu0 %741, %v454
      %v743 = vpop.permute.xlu0 %742
      %744 = vset.pattern.permute.xlu0 1
      %745 = vperm.xlu0 %744, %v455
      %v746 = vpop.permute.xlu0 %745
      %747 = vset.pattern.permute.xlu0 1
      %748 = vperm.xlu0 %747, %v456
      %v749 = vpop.permute.xlu0 %748
      %750 = vset.pattern.permute.xlu0 1
      %751 = vperm.xlu0 %750, %v457
      %v752 = vpop.permute.xlu0 %751
      %753 = vset.pattern.permute.xlu0 1
      %754 = vperm.xlu0 %753, %v458
      %v755 = vpop.permute.xlu0 %754
      %756 = vset.pattern.permute.xlu0 1
      %757 = vperm.xlu0 %756, %v459
      %v758 = vpop.permute.xlu0 %757
      %759 = vset.pattern.permute.xlu0 1
      %760 = vperm.xlu0 %759, %v460
      %v761 = vpop.permute.xlu0 %760
      %762 = vset.pattern.permute.xlu0 1
      %763 = vperm.xlu0 %762, %v461
      %v764 = vpop.permute.xlu0 %763
      %765 = vset.pattern.permute.xlu0 1
      %766 = vperm.xlu0 %765, %v462
      %v767 = vpop.permute.xlu0 %766
      %vm768 = vcmp.eq.s32.totalorder %v430, %v722
      %vm769 = vcmp.eq.s32.totalorder %v430, %v725
      %vm770 = vcmp.eq.s32.totalorder %v430, %v728
      %vm771 = vcmp.eq.s32.totalorder %v430, %v731
      %vm772 = vcmp.eq.s32.totalorder %v430, %v734
      %vm773 = vcmp.eq.s32.totalorder %v430, %v737
      %vm774 = vcmp.eq.s32.totalorder %v430, %v740
      %vm775 = vcmp.eq.s32.totalorder %v430, %v743
      %vm776 = vcmp.eq.s32.totalorder %v430, %v746
      %vm777 = vcmp.eq.s32.totalorder %v430, %v749
      %vm778 = vcmp.eq.s32.totalorder %v430, %v752
      %vm779 = vcmp.eq.s32.totalorder %v430, %v755
      %vm780 = vcmp.eq.s32.totalorder %v430, %v758
      %vm781 = vcmp.eq.s32.totalorder %v430, %v761
      %vm782 = vcmp.eq.s32.totalorder %v430, %v764
      %vm783 = vcmp.eq.s32.totalorder %v430, %v767
      %v784 = vsel %vm768, 1.0, 0.0
      %v785 = vsel %vm769, 1.0, 0.0
      %v786 = vsel %vm770, 1.0, 0.0
      %v787 = vsel %vm771, 1.0, 0.0
      %v788 = vsel %vm772, 1.0, 0.0
      %v789 = vsel %vm773, 1.0, 0.0
      %v790 = vsel %vm774, 1.0, 0.0
      %v791 = vsel %vm775, 1.0, 0.0
      %v792 = vsel %vm776, 1.0, 0.0
      %v793 = vsel %vm777, 1.0, 0.0
      %v794 = vsel %vm778, 1.0, 0.0
      %v795 = vsel %vm779, 1.0, 0.0
      %v796 = vsel %vm780, 1.0, 0.0
      %v797 = vsel %vm781, 1.0, 0.0
      %v798 = vsel %vm782, 1.0, 0.0
      %v799 = vsel %vm783, 1.0, 0.0
      %v800 = vpack.c.bf16 %v785, %v784
      %v801 = vpack.c.bf16 %v787, %v786
      %v802 = vpack.c.bf16 %v789, %v788
      %v803 = vpack.c.bf16 %v791, %v790
      %v804 = vpack.c.bf16 %v793, %v792
      %v805 = vpack.c.bf16 %v795, %v794
      %v806 = vpack.c.bf16 %v797, %v796
      %v807 = vpack.c.bf16 %v799, %v798
      %808 = vmatpush.bf16.msra.mxu0 %v590
      %809 = vmatpush.bf16.msra.mxu0 %v589
      %810 = vmatpush.bf16.msra.mxu0 %v588
      %811 = vmatpush.bf16.msra.mxu0 %v587
      %812 = vmatpush.bf16.msra.mxu0 %v586
      %813 = vmatpush.bf16.msra.mxu0 %v585
      %814 = vmatpush.bf16.msra.mxu0 %v584
      %815 = vmatpush.bf16.msra.mxu0 %v583
      %816 = vmatmul.bf16.gmra.mxu0 %v800
      %v817 = vpop.f32.mrf.mxu0
      %v818 = vadd.f32 0.0, %v817
      %v819 = vpop.f32.mrf.mxu0
      %v820 = vadd.f32 0.0, %v819
      %821 = vmatmul.bf16.gmra.mxu0 %v801
      %v822 = vpop.f32.mrf.mxu0
      %v823 = vadd.f32 0.0, %v822
      %v824 = vpop.f32.mrf.mxu0
      %v825 = vadd.f32 0.0, %v824
      %826 = vmatmul.bf16.gmra.mxu0 %v802
      %v827 = vpop.f32.mrf.mxu0
      %v828 = vadd.f32 0.0, %v827
      %v829 = vpop.f32.mrf.mxu0
      %v830 = vadd.f32 0.0, %v829
      %831 = vmatmul.bf16.gmra.mxu0 %v803
      %v832 = vpop.f32.mrf.mxu0
      %v833 = vadd.f32 0.0, %v832
      %v834 = vpop.f32.mrf.mxu0
      %v835 = vadd.f32 0.0, %v834
      %836 = vmatmul.bf16.gmra.mxu0 %v804
      %v837 = vpop.f32.mrf.mxu0
      %v838 = vadd.f32 0.0, %v837
      %v839 = vpop.f32.mrf.mxu0
      %v840 = vadd.f32 0.0, %v839
      %841 = vmatmul.bf16.gmra.mxu0 %v805
      %v842 = vpop.f32.mrf.mxu0
      %v843 = vadd.f32 0.0, %v842
      %v844 = vpop.f32.mrf.mxu0
      %v845 = vadd.f32 0.0, %v844
      %846 = vmatmul.bf16.gmra.mxu0 %v806
      %v847 = vpop.f32.mrf.mxu0
      %v848 = vadd.f32 0.0, %v847
      %v849 = vpop.f32.mrf.mxu0
      %v850 = vadd.f32 0.0, %v849
      %851 = vmatmul.bf16.gmra.mxu0 %v807
      %v852 = vpop.f32.mrf.mxu0
      %v853 = vadd.f32 0.0, %v852
      %v854 = vpop.f32.mrf.mxu0
      %v855 = vadd.f32 0.0, %v854
      %856 = vdwg.mxu0
      %v857 = vadd.f32 %v648, %v818
      %v858 = vadd.f32 %v649, %v820
      %v859 = vadd.f32 %v650, %v823
      %v860 = vadd.f32 %v651, %v825
      %v861 = vadd.f32 %v652, %v828
      %v862 = vadd.f32 %v653, %v830
      %v863 = vadd.f32 %v654, %v833
      %v864 = vadd.f32 %v655, %v835
      %v865 = vadd.f32 %v656, %v838
      %v866 = vadd.f32 %v657, %v840
      %v867 = vadd.f32 %v658, %v843
      %v868 = vadd.f32 %v659, %v845
      %v869 = vadd.f32 %v660, %v848
      %v870 = vadd.f32 %v661, %v850
      %v871 = vadd.f32 %v662, %v853
      %v872 = vadd.f32 %v663, %v855
      %v873 = vmul.f32 %v818, %v818
      %v874 = vmul.f32 %v820, %v820
      %v875 = vmul.f32 %v823, %v823
      %v876 = vmul.f32 %v825, %v825
      %v877 = vmul.f32 %v828, %v828
      %v878 = vmul.f32 %v830, %v830
      %v879 = vmul.f32 %v833, %v833
      %v880 = vmul.f32 %v835, %v835
      %v881 = vmul.f32 %v838, %v838
      %v882 = vmul.f32 %v840, %v840
      %v883 = vmul.f32 %v843, %v843
      %v884 = vmul.f32 %v845, %v845
      %v885 = vmul.f32 %v848, %v848
      %v886 = vmul.f32 %v850, %v850
      %v887 = vmul.f32 %v853, %v853
      %v888 = vmul.f32 %v855, %v855
      %v889 = vadd.f32 %v680, %v873
      %v890 = vadd.f32 %v681, %v874
      %v891 = vadd.f32 %v682, %v875
      %v892 = vadd.f32 %v683, %v876
      %v893 = vadd.f32 %v684, %v877
      %v894 = vadd.f32 %v685, %v878
      %v895 = vadd.f32 %v686, %v879
      %v896 = vadd.f32 %v687, %v880
      %v897 = vadd.f32 %v688, %v881
      %v898 = vadd.f32 %v689, %v882
      %v899 = vadd.f32 %v690, %v883
      %v900 = vadd.f32 %v691, %v884
      %v901 = vadd.f32 %v692, %v885
      %v902 = vadd.f32 %v693, %v886
      %v903 = vadd.f32 %v694, %v887
      %v904 = vadd.f32 %v695, %v888
      %v905 = vpack.c.bf16 %v820, %v818
      %v906 = vpack.c.bf16 %v825, %v823
      %v907 = vpack.c.bf16 %v830, %v828
      %v908 = vpack.c.bf16 %v835, %v833
      %v909 = vpack.c.bf16 %v840, %v838
      %v910 = vpack.c.bf16 %v845, %v843
      %v911 = vpack.c.bf16 %v850, %v848
      %v912 = vpack.c.bf16 %v855, %v853
      %s913 = scalar_lea.vmem %s3, 64
      %v914 = vld [vmem:[%s913] sm:$0xf]
      %v915 = vld [vmem:[%s913 + $0x4] sm:$0xf]
      %v916 = vld [vmem:[%s913 + $0x8] sm:$0xf]
      %v917 = vld [vmem:[%s913 + $0xc] sm:$0xf]
      %v918 = vld [vmem:[%s913 + $0x10] sm:$0xf]
      %v919 = vld [vmem:[%s913 + $0x14] sm:$0xf]
      %v920 = vld [vmem:[%s913 + $0x18] sm:$0xf]
      %v921 = vld [vmem:[%s913 + $0x1c] sm:$0xf]
      %v922 = vld [vmem:[%s913 + $0x20] sm:$0xf]
      %v923 = vld [vmem:[%s913 + $0x24] sm:$0xf]
      %v924 = vld [vmem:[%s913 + $0x28] sm:$0xf]
      %v925 = vld [vmem:[%s913 + $0x2c] sm:$0xf]
      %v926 = vld [vmem:[%s913 + $0x30] sm:$0xf]
      %v927 = vld [vmem:[%s913 + $0x34] sm:$0xf]
      %v928 = vld [vmem:[%s913 + $0x38] sm:$0xf]
      %v929 = vld [vmem:[%s913 + $0x3c] sm:$0xf]
      %v946 = vunpack.c.l.b16 %v914
      %v947 = vunpack.c.l.b16 %v915
      %v948 = vunpack.c.l.b16 %v916
      %v949 = vunpack.c.l.b16 %v917
      %v950 = vunpack.c.l.b16 %v918
      %v951 = vunpack.c.l.b16 %v919
      %v952 = vunpack.c.l.b16 %v920
      %v953 = vunpack.c.l.b16 %v921
      %v954 = vunpack.c.l.b16 %v922
      %v955 = vunpack.c.l.b16 %v923
      %v956 = vunpack.c.l.b16 %v924
      %v957 = vunpack.c.l.b16 %v925
      %v958 = vunpack.c.l.b16 %v926
      %v959 = vunpack.c.l.b16 %v927
      %v960 = vunpack.c.l.b16 %v928
      %v961 = vunpack.c.l.b16 %v929
      %v962 = vpack.c.b16 %v947, %v946
      %v963 = vpack.c.b16 %v949, %v948
      %v964 = vpack.c.b16 %v951, %v950
      %v965 = vpack.c.b16 %v953, %v952
      %v966 = vpack.c.b16 %v955, %v954
      %v967 = vpack.c.b16 %v957, %v956
      %v968 = vpack.c.b16 %v959, %v958
      %v969 = vpack.c.b16 %v961, %v960
      %978 = vmatpush.bf16.msra.mxu0 %v969
      %979 = vmatpush.bf16.msra.mxu0 %v968
      %980 = vmatpush.bf16.msra.mxu0 %v967
      %981 = vmatpush.bf16.msra.mxu0 %v966
      %982 = vmatpush.bf16.msra.mxu0 %v965
      %983 = vmatpush.bf16.msra.mxu0 %v964
      %984 = vmatpush.bf16.msra.mxu0 %v963
      %985 = vmatpush.bf16.msra.mxu0 %v962
      %986 = vmatmul.bf16.gmra.mxu0 %v905
      %v987 = vpop.f32.mrf.mxu0
      %v988 = vadd.f32 0.0, %v987
      %v989 = vpop.f32.mrf.mxu0
      %v990 = vadd.f32 0.0, %v989
      %991 = vmatmul.bf16.gmra.mxu0 %v906
      %v992 = vpop.f32.mrf.mxu0
      %v993 = vadd.f32 0.0, %v992
      %v994 = vpop.f32.mrf.mxu0
      %v995 = vadd.f32 0.0, %v994
      %996 = vmatmul.bf16.gmra.mxu0 %v907
      %v997 = vpop.f32.mrf.mxu0
      %v998 = vadd.f32 0.0, %v997
      %v999 = vpop.f32.mrf.mxu0
      %v1000 = vadd.f32 0.0, %v999
      %1001 = vmatmul.bf16.gmra.mxu0 %v908
      %v1002 = vpop.f32.mrf.mxu0
      %v1003 = vadd.f32 0.0, %v1002
      %v1004 = vpop.f32.mrf.mxu0
      %v1005 = vadd.f32 0.0, %v1004
      %1006 = vmatmul.bf16.gmra.mxu0 %v909
      %v1007 = vpop.f32.mrf.mxu0
      %v1008 = vadd.f32 0.0, %v1007
      %v1009 = vpop.f32.mrf.mxu0
      %v1010 = vadd.f32 0.0, %v1009
      %1011 = vmatmul.bf16.gmra.mxu0 %v910
      %v1012 = vpop.f32.mrf.mxu0
      %v1013 = vadd.f32 0.0, %v1012
      %v1014 = vpop.f32.mrf.mxu0
      %v1015 = vadd.f32 0.0, %v1014
      %1016 = vmatmul.bf16.gmra.mxu0 %v911
      %v1017 = vpop.f32.mrf.mxu0
      %v1018 = vadd.f32 0.0, %v1017
      %v1019 = vpop.f32.mrf.mxu0
      %v1020 = vadd.f32 0.0, %v1019
      %1021 = vmatmul.bf16.gmra.mxu0 %v912
      %v1022 = vpop.f32.mrf.mxu0
      %v1023 = vadd.f32 0.0, %v1022
      %v1024 = vpop.f32.mrf.mxu0
      %v1025 = vadd.f32 0.0, %v1024
      %1026 = vdwg.mxu0
      %v1043 = vunpack.c.l.b16 %v704
      %v1044 = vunpack.c.l.b16 %v705
      %v1045 = vunpack.c.l.b16 %v706
      %v1046 = vunpack.c.l.b16 %v707
      %v1047 = vunpack.c.l.b16 %v708
      %v1048 = vunpack.c.l.b16 %v709
      %v1049 = vunpack.c.l.b16 %v710
      %v1050 = vunpack.c.l.b16 %v711
      %v1051 = vunpack.c.l.b16 %v712
      %v1052 = vunpack.c.l.b16 %v713
      %v1053 = vunpack.c.l.b16 %v714
      %v1054 = vunpack.c.l.b16 %v715
      %v1055 = vunpack.c.l.b16 %v716
      %v1056 = vunpack.c.l.b16 %v717
      %v1057 = vunpack.c.l.b16 %v718
      %v1058 = vunpack.c.l.b16 %v719
      %v1059 = vpack.c.b16 %v1044, %v1043
      %v1060 = vpack.c.b16 %v1046, %v1045
      %v1061 = vpack.c.b16 %v1048, %v1047
      %v1062 = vpack.c.b16 %v1050, %v1049
      %v1063 = vpack.c.b16 %v1052, %v1051
      %v1064 = vpack.c.b16 %v1054, %v1053
      %v1065 = vpack.c.b16 %v1056, %v1055
      %v1066 = vpack.c.b16 %v1058, %v1057
      %1075 = vmatpush.bf16.msra.mxu0 %v1066
      %1076 = vmatpush.bf16.msra.mxu0 %v1065
      %1077 = vmatpush.bf16.msra.mxu0 %v1064
      %1078 = vmatpush.bf16.msra.mxu0 %v1063
      %1079 = vmatpush.bf16.msra.mxu0 %v1062
      %1080 = vmatpush.bf16.msra.mxu0 %v1061
      %1081 = vmatpush.bf16.msra.mxu0 %v1060
      %1082 = vmatpush.bf16.msra.mxu0 %v1059
      %1083 = vmatmul.bf16.gmra.mxu0 %v696
      %v1084 = vpop.f32.mrf.mxu0
      %v1085 = vadd.f32 %v988, %v1084
      %v1086 = vpop.f32.mrf.mxu0
      %v1087 = vadd.f32 %v990, %v1086
      %1088 = vmatmul.bf16.gmra.mxu0 %v697
      %v1089 = vpop.f32.mrf.mxu0
      %v1090 = vadd.f32 %v993, %v1089
      %v1091 = vpop.f32.mrf.mxu0
      %v1092 = vadd.f32 %v995, %v1091
      %1093 = vmatmul.bf16.gmra.mxu0 %v698
      %v1094 = vpop.f32.mrf.mxu0
      %v1095 = vadd.f32 %v998, %v1094
      %v1096 = vpop.f32.mrf.mxu0
      %v1097 = vadd.f32 %v1000, %v1096
      %1098 = vmatmul.bf16.gmra.mxu0 %v699
      %v1099 = vpop.f32.mrf.mxu0
      %v1100 = vadd.f32 %v1003, %v1099
      %v1101 = vpop.f32.mrf.mxu0
      %v1102 = vadd.f32 %v1005, %v1101
      %1103 = vmatmul.bf16.gmra.mxu0 %v700
      %v1104 = vpop.f32.mrf.mxu0
      %v1105 = vadd.f32 %v1008, %v1104
      %v1106 = vpop.f32.mrf.mxu0
      %v1107 = vadd.f32 %v1010, %v1106
      %1108 = vmatmul.bf16.gmra.mxu0 %v701
      %v1109 = vpop.f32.mrf.mxu0
      %v1110 = vadd.f32 %v1013, %v1109
      %v1111 = vpop.f32.mrf.mxu0
      %v1112 = vadd.f32 %v1015, %v1111
      %1113 = vmatmul.bf16.gmra.mxu0 %v702
      %v1114 = vpop.f32.mrf.mxu0
      %v1115 = vadd.f32 %v1018, %v1114
      %v1116 = vpop.f32.mrf.mxu0
      %v1117 = vadd.f32 %v1020, %v1116
      %1118 = vmatmul.bf16.gmra.mxu0 %v703
      %v1119 = vpop.f32.mrf.mxu0
      %v1120 = vadd.f32 %v1023, %v1119
      %v1121 = vpop.f32.mrf.mxu0
      %v1122 = vadd.f32 %v1025, %v1121
      %1123 = vdwg.mxu0
      %1124 = vset.pattern.permute.xlu0 2
      %1125 = vperm.xlu0 %1124, %v447
      %v1126 = vpop.permute.xlu0 %1125
      %1127 = vset.pattern.permute.xlu0 2
      %1128 = vperm.xlu0 %1127, %v448
      %v1129 = vpop.permute.xlu0 %1128
      %1130 = vset.pattern.permute.xlu0 2
      %1131 = vperm.xlu0 %1130, %v449
      %v1132 = vpop.permute.xlu0 %1131
      %1133 = vset.pattern.permute.xlu0 2
      %1134 = vperm.xlu0 %1133, %v450
      %v1135 = vpop.permute.xlu0 %1134
      %1136 = vset.pattern.permute.xlu0 2
      %1137 = vperm.xlu0 %1136, %v451
      %v1138 = vpop.permute.xlu0 %1137
      %1139 = vset.pattern.permute.xlu0 2
      %1140 = vperm.xlu0 %1139, %v452
      %v1141 = vpop.permute.xlu0 %1140
      %1142 = vset.pattern.permute.xlu0 2
      %1143 = vperm.xlu0 %1142, %v453
      %v1144 = vpop.permute.xlu0 %1143
      %1145 = vset.pattern.permute.xlu0 2
      %1146 = vperm.xlu0 %1145, %v454
      %v1147 = vpop.permute.xlu0 %1146
      %1148 = vset.pattern.permute.xlu0 2
      %1149 = vperm.xlu0 %1148, %v455
      %v1150 = vpop.permute.xlu0 %1149
      %1151 = vset.pattern.permute.xlu0 2
      %1152 = vperm.xlu0 %1151, %v456
      %v1153 = vpop.permute.xlu0 %1152
      %1154 = vset.pattern.permute.xlu0 2
      %1155 = vperm.xlu0 %1154, %v457
      %v1156 = vpop.permute.xlu0 %1155
      %1157 = vset.pattern.permute.xlu0 2
      %1158 = vperm.xlu0 %1157, %v458
      %v1159 = vpop.permute.xlu0 %1158
      %1160 = vset.pattern.permute.xlu0 2
      %1161 = vperm.xlu0 %1160, %v459
      %v1162 = vpop.permute.xlu0 %1161
      %1163 = vset.pattern.permute.xlu0 2
      %1164 = vperm.xlu0 %1163, %v460
      %v1165 = vpop.permute.xlu0 %1164
      %1166 = vset.pattern.permute.xlu0 2
      %1167 = vperm.xlu0 %1166, %v461
      %v1168 = vpop.permute.xlu0 %1167
      %1169 = vset.pattern.permute.xlu0 2
      %1170 = vperm.xlu0 %1169, %v462
      %v1171 = vpop.permute.xlu0 %1170
      %vm1172 = vcmp.eq.s32.totalorder %v430, %v1126
      %vm1173 = vcmp.eq.s32.totalorder %v430, %v1129
      %vm1174 = vcmp.eq.s32.totalorder %v430, %v1132
      %vm1175 = vcmp.eq.s32.totalorder %v430, %v1135
      %vm1176 = vcmp.eq.s32.totalorder %v430, %v1138
      %vm1177 = vcmp.eq.s32.totalorder %v430, %v1141
      %vm1178 = vcmp.eq.s32.totalorder %v430, %v1144
      %vm1179 = vcmp.eq.s32.totalorder %v430, %v1147
      %vm1180 = vcmp.eq.s32.totalorder %v430, %v1150
      %vm1181 = vcmp.eq.s32.totalorder %v430, %v1153
      %vm1182 = vcmp.eq.s32.totalorder %v430, %v1156
      %vm1183 = vcmp.eq.s32.totalorder %v430, %v1159
      %vm1184 = vcmp.eq.s32.totalorder %v430, %v1162
      %vm1185 = vcmp.eq.s32.totalorder %v430, %v1165
      %vm1186 = vcmp.eq.s32.totalorder %v430, %v1168
      %vm1187 = vcmp.eq.s32.totalorder %v430, %v1171
      %v1188 = vsel %vm1172, 1.0, 0.0
      %v1189 = vsel %vm1173, 1.0, 0.0
      %v1190 = vsel %vm1174, 1.0, 0.0
      %v1191 = vsel %vm1175, 1.0, 0.0
      %v1192 = vsel %vm1176, 1.0, 0.0
      %v1193 = vsel %vm1177, 1.0, 0.0
      %v1194 = vsel %vm1178, 1.0, 0.0
      %v1195 = vsel %vm1179, 1.0, 0.0
      %v1196 = vsel %vm1180, 1.0, 0.0
      %v1197 = vsel %vm1181, 1.0, 0.0
      %v1198 = vsel %vm1182, 1.0, 0.0
      %v1199 = vsel %vm1183, 1.0, 0.0
      %v1200 = vsel %vm1184, 1.0, 0.0
      %v1201 = vsel %vm1185, 1.0, 0.0
      %v1202 = vsel %vm1186, 1.0, 0.0
      %v1203 = vsel %vm1187, 1.0, 0.0
      %v1204 = vpack.c.bf16 %v1189, %v1188
      %v1205 = vpack.c.bf16 %v1191, %v1190
      %v1206 = vpack.c.bf16 %v1193, %v1192
      %v1207 = vpack.c.bf16 %v1195, %v1194
      %v1208 = vpack.c.bf16 %v1197, %v1196
      %v1209 = vpack.c.bf16 %v1199, %v1198
      %v1210 = vpack.c.bf16 %v1201, %v1200
      %v1211 = vpack.c.bf16 %v1203, %v1202
      %1212 = vmatpush.bf16.msra.mxu0 %v590
      %1213 = vmatpush.bf16.msra.mxu0 %v589
      %1214 = vmatpush.bf16.msra.mxu0 %v588
      %1215 = vmatpush.bf16.msra.mxu0 %v587
      %1216 = vmatpush.bf16.msra.mxu0 %v586
      %1217 = vmatpush.bf16.msra.mxu0 %v585
      %1218 = vmatpush.bf16.msra.mxu0 %v584
      %1219 = vmatpush.bf16.msra.mxu0 %v583
      %1220 = vmatmul.bf16.gmra.mxu0 %v1204
      %v1221 = vpop.f32.mrf.mxu0
      %v1222 = vadd.f32 0.0, %v1221
      %v1223 = vpop.f32.mrf.mxu0
      %v1224 = vadd.f32 0.0, %v1223
      %1225 = vmatmul.bf16.gmra.mxu0 %v1205
      %v1226 = vpop.f32.mrf.mxu0
      %v1227 = vadd.f32 0.0, %v1226
      %v1228 = vpop.f32.mrf.mxu0
      %v1229 = vadd.f32 0.0, %v1228
      %1230 = vmatmul.bf16.gmra.mxu0 %v1206
      %v1231 = vpop.f32.mrf.mxu0
      %v1232 = vadd.f32 0.0, %v1231
      %v1233 = vpop.f32.mrf.mxu0
      %v1234 = vadd.f32 0.0, %v1233
      %1235 = vmatmul.bf16.gmra.mxu0 %v1207
      %v1236 = vpop.f32.mrf.mxu0
      %v1237 = vadd.f32 0.0, %v1236
      %v1238 = vpop.f32.mrf.mxu0
      %v1239 = vadd.f32 0.0, %v1238
      %1240 = vmatmul.bf16.gmra.mxu0 %v1208
      %v1241 = vpop.f32.mrf.mxu0
      %v1242 = vadd.f32 0.0, %v1241
      %v1243 = vpop.f32.mrf.mxu0
      %v1244 = vadd.f32 0.0, %v1243
      %1245 = vmatmul.bf16.gmra.mxu0 %v1209
      %v1246 = vpop.f32.mrf.mxu0
      %v1247 = vadd.f32 0.0, %v1246
      %v1248 = vpop.f32.mrf.mxu0
      %v1249 = vadd.f32 0.0, %v1248
      %1250 = vmatmul.bf16.gmra.mxu0 %v1210
      %v1251 = vpop.f32.mrf.mxu0
      %v1252 = vadd.f32 0.0, %v1251
      %v1253 = vpop.f32.mrf.mxu0
      %v1254 = vadd.f32 0.0, %v1253
      %1255 = vmatmul.bf16.gmra.mxu0 %v1211
      %v1256 = vpop.f32.mrf.mxu0
      %v1257 = vadd.f32 0.0, %v1256
      %v1258 = vpop.f32.mrf.mxu0
      %v1259 = vadd.f32 0.0, %v1258
      %1260 = vdwg.mxu0
      %v1261 = vadd.f32 %v857, %v1222
      %v1262 = vadd.f32 %v858, %v1224
      %v1263 = vadd.f32 %v859, %v1227
      %v1264 = vadd.f32 %v860, %v1229
      %v1265 = vadd.f32 %v861, %v1232
      %v1266 = vadd.f32 %v862, %v1234
      %v1267 = vadd.f32 %v863, %v1237
      %v1268 = vadd.f32 %v864, %v1239
      %v1269 = vadd.f32 %v865, %v1242
      %v1270 = vadd.f32 %v866, %v1244
      %v1271 = vadd.f32 %v867, %v1247
      %v1272 = vadd.f32 %v868, %v1249
      %v1273 = vadd.f32 %v869, %v1252
      %v1274 = vadd.f32 %v870, %v1254
      %v1275 = vadd.f32 %v871, %v1257
      %v1276 = vadd.f32 %v872, %v1259
      %v1277 = vmul.f32 %v1222, %v1222
      %v1278 = vmul.f32 %v1224, %v1224
      %v1279 = vmul.f32 %v1227, %v1227
      %v1280 = vmul.f32 %v1229, %v1229
      %v1281 = vmul.f32 %v1232, %v1232
      %v1282 = vmul.f32 %v1234, %v1234
      %v1283 = vmul.f32 %v1237, %v1237
      %v1284 = vmul.f32 %v1239, %v1239
      %v1285 = vmul.f32 %v1242, %v1242
      %v1286 = vmul.f32 %v1244, %v1244
      %v1287 = vmul.f32 %v1247, %v1247
      %v1288 = vmul.f32 %v1249, %v1249
      %v1289 = vmul.f32 %v1252, %v1252
      %v1290 = vmul.f32 %v1254, %v1254
      %v1291 = vmul.f32 %v1257, %v1257
      %v1292 = vmul.f32 %v1259, %v1259
      %v1293 = vadd.f32 %v889, %v1277
      %v1294 = vadd.f32 %v890, %v1278
      %v1295 = vadd.f32 %v891, %v1279
      %v1296 = vadd.f32 %v892, %v1280
      %v1297 = vadd.f32 %v893, %v1281
      %v1298 = vadd.f32 %v894, %v1282
      %v1299 = vadd.f32 %v895, %v1283
      %v1300 = vadd.f32 %v896, %v1284
      %v1301 = vadd.f32 %v897, %v1285
      %v1302 = vadd.f32 %v898, %v1286
      %v1303 = vadd.f32 %v899, %v1287
      %v1304 = vadd.f32 %v900, %v1288
      %v1305 = vadd.f32 %v901, %v1289
      %v1306 = vadd.f32 %v902, %v1290
      %v1307 = vadd.f32 %v903, %v1291
      %v1308 = vadd.f32 %v904, %v1292
      %v1309 = vpack.c.bf16 %v1224, %v1222
      %v1310 = vpack.c.bf16 %v1229, %v1227
      %v1311 = vpack.c.bf16 %v1234, %v1232
      %v1312 = vpack.c.bf16 %v1239, %v1237
      %v1313 = vpack.c.bf16 %v1244, %v1242
      %v1314 = vpack.c.bf16 %v1249, %v1247
      %v1315 = vpack.c.bf16 %v1254, %v1252
      %v1316 = vpack.c.bf16 %v1259, %v1257
      %s1317 = scalar_lea.vmem %s3, 128
      %v1318 = vld [vmem:[%s1317] sm:$0xf]
      %v1319 = vld [vmem:[%s1317 + $0x4] sm:$0xf]
      %v1320 = vld [vmem:[%s1317 + $0x8] sm:$0xf]
      %v1321 = vld [vmem:[%s1317 + $0xc] sm:$0xf]
      %v1322 = vld [vmem:[%s1317 + $0x10] sm:$0xf]
      %v1323 = vld [vmem:[%s1317 + $0x14] sm:$0xf]
      %v1324 = vld [vmem:[%s1317 + $0x18] sm:$0xf]
      %v1325 = vld [vmem:[%s1317 + $0x1c] sm:$0xf]
      %v1326 = vld [vmem:[%s1317 + $0x20] sm:$0xf]
      %v1327 = vld [vmem:[%s1317 + $0x24] sm:$0xf]
      %v1328 = vld [vmem:[%s1317 + $0x28] sm:$0xf]
      %v1329 = vld [vmem:[%s1317 + $0x2c] sm:$0xf]
      %v1330 = vld [vmem:[%s1317 + $0x30] sm:$0xf]
      %v1331 = vld [vmem:[%s1317 + $0x34] sm:$0xf]
      %v1332 = vld [vmem:[%s1317 + $0x38] sm:$0xf]
      %v1333 = vld [vmem:[%s1317 + $0x3c] sm:$0xf]
      %v1350 = vunpack.c.l.b16 %v1318
      %v1351 = vunpack.c.l.b16 %v1319
      %v1352 = vunpack.c.l.b16 %v1320
      %v1353 = vunpack.c.l.b16 %v1321
      %v1354 = vunpack.c.l.b16 %v1322
      %v1355 = vunpack.c.l.b16 %v1323
      %v1356 = vunpack.c.l.b16 %v1324
      %v1357 = vunpack.c.l.b16 %v1325
      %v1358 = vunpack.c.l.b16 %v1326
      %v1359 = vunpack.c.l.b16 %v1327
      %v1360 = vunpack.c.l.b16 %v1328
      %v1361 = vunpack.c.l.b16 %v1329
      %v1362 = vunpack.c.l.b16 %v1330
      %v1363 = vunpack.c.l.b16 %v1331
      %v1364 = vunpack.c.l.b16 %v1332
      %v1365 = vunpack.c.l.b16 %v1333
      %v1366 = vpack.c.b16 %v1351, %v1350
      %v1367 = vpack.c.b16 %v1353, %v1352
      %v1368 = vpack.c.b16 %v1355, %v1354
      %v1369 = vpack.c.b16 %v1357, %v1356
      %v1370 = vpack.c.b16 %v1359, %v1358
      %v1371 = vpack.c.b16 %v1361, %v1360
      %v1372 = vpack.c.b16 %v1363, %v1362
      %v1373 = vpack.c.b16 %v1365, %v1364
      %1382 = vmatpush.bf16.msra.mxu0 %v1373
      %1383 = vmatpush.bf16.msra.mxu0 %v1372
      %1384 = vmatpush.bf16.msra.mxu0 %v1371
      %1385 = vmatpush.bf16.msra.mxu0 %v1370
      %1386 = vmatpush.bf16.msra.mxu0 %v1369
      %1387 = vmatpush.bf16.msra.mxu0 %v1368
      %1388 = vmatpush.bf16.msra.mxu0 %v1367
      %1389 = vmatpush.bf16.msra.mxu0 %v1366
      %1390 = vmatmul.bf16.gmra.mxu0 %v1309
      %v1391 = vpop.f32.mrf.mxu0
      %v1392 = vadd.f32 0.0, %v1391
      %v1393 = vpop.f32.mrf.mxu0
      %v1394 = vadd.f32 0.0, %v1393
      %1395 = vmatmul.bf16.gmra.mxu0 %v1310
      %v1396 = vpop.f32.mrf.mxu0
      %v1397 = vadd.f32 0.0, %v1396
      %v1398 = vpop.f32.mrf.mxu0
      %v1399 = vadd.f32 0.0, %v1398
      %1400 = vmatmul.bf16.gmra.mxu0 %v1311
      %v1401 = vpop.f32.mrf.mxu0
      %v1402 = vadd.f32 0.0, %v1401
      %v1403 = vpop.f32.mrf.mxu0
      %v1404 = vadd.f32 0.0, %v1403
      %1405 = vmatmul.bf16.gmra.mxu0 %v1312
      %v1406 = vpop.f32.mrf.mxu0
      %v1407 = vadd.f32 0.0, %v1406
      %v1408 = vpop.f32.mrf.mxu0
      %v1409 = vadd.f32 0.0, %v1408
      %1410 = vmatmul.bf16.gmra.mxu0 %v1313
      %v1411 = vpop.f32.mrf.mxu0
      %v1412 = vadd.f32 0.0, %v1411
      %v1413 = vpop.f32.mrf.mxu0
      %v1414 = vadd.f32 0.0, %v1413
      %1415 = vmatmul.bf16.gmra.mxu0 %v1314
      %v1416 = vpop.f32.mrf.mxu0
      %v1417 = vadd.f32 0.0, %v1416
      %v1418 = vpop.f32.mrf.mxu0
      %v1419 = vadd.f32 0.0, %v1418
      %1420 = vmatmul.bf16.gmra.mxu0 %v1315
      %v1421 = vpop.f32.mrf.mxu0
      %v1422 = vadd.f32 0.0, %v1421
      %v1423 = vpop.f32.mrf.mxu0
      %v1424 = vadd.f32 0.0, %v1423
      %1425 = vmatmul.bf16.gmra.mxu0 %v1316
      %v1426 = vpop.f32.mrf.mxu0
      %v1427 = vadd.f32 0.0, %v1426
      %v1428 = vpop.f32.mrf.mxu0
      %v1429 = vadd.f32 0.0, %v1428
      %1430 = vdwg.mxu0
      %v1431 = vadd.f32 %v1085, %v1392
      %v1432 = vadd.f32 %v1087, %v1394
      %v1433 = vadd.f32 %v1090, %v1397
      %v1434 = vadd.f32 %v1092, %v1399
      %v1435 = vadd.f32 %v1095, %v1402
      %v1436 = vadd.f32 %v1097, %v1404
      %v1437 = vadd.f32 %v1100, %v1407
      %v1438 = vadd.f32 %v1102, %v1409
      %v1439 = vadd.f32 %v1105, %v1412
      %v1440 = vadd.f32 %v1107, %v1414
      %v1441 = vadd.f32 %v1110, %v1417
      %v1442 = vadd.f32 %v1112, %v1419
      %v1443 = vadd.f32 %v1115, %v1422
      %v1444 = vadd.f32 %v1117, %v1424
      %v1445 = vadd.f32 %v1120, %v1427
      %v1446 = vadd.f32 %v1122, %v1429
      %1447 = vset.pattern.permute.xlu0 3
      %1448 = vperm.xlu0 %1447, %v447
      %v1449 = vpop.permute.xlu0 %1448
      %1450 = vset.pattern.permute.xlu0 3
      %1451 = vperm.xlu0 %1450, %v448
      %v1452 = vpop.permute.xlu0 %1451
      %1453 = vset.pattern.permute.xlu0 3
      %1454 = vperm.xlu0 %1453, %v449
      %v1455 = vpop.permute.xlu0 %1454
      %1456 = vset.pattern.permute.xlu0 3
      %1457 = vperm.xlu0 %1456, %v450
      %v1458 = vpop.permute.xlu0 %1457
      %1459 = vset.pattern.permute.xlu0 3
      %1460 = vperm.xlu0 %1459, %v451
      %v1461 = vpop.permute.xlu0 %1460
      %1462 = vset.pattern.permute.xlu0 3
      %1463 = vperm.xlu0 %1462, %v452
      %v1464 = vpop.permute.xlu0 %1463
      %1465 = vset.pattern.permute.xlu0 3
      %1466 = vperm.xlu0 %1465, %v453
      %v1467 = vpop.permute.xlu0 %1466
      %1468 = vset.pattern.permute.xlu0 3
      %1469 = vperm.xlu0 %1468, %v454
      %v1470 = vpop.permute.xlu0 %1469
      %1471 = vset.pattern.permute.xlu0 3
      %1472 = vperm.xlu0 %1471, %v455
      %v1473 = vpop.permute.xlu0 %1472
      %1474 = vset.pattern.permute.xlu0 3
      %1475 = vperm.xlu0 %1474, %v456
      %v1476 = vpop.permute.xlu0 %1475
      %1477 = vset.pattern.permute.xlu0 3
      %1478 = vperm.xlu0 %1477, %v457
      %v1479 = vpop.permute.xlu0 %1478
      %1480 = vset.pattern.permute.xlu0 3
      %1481 = vperm.xlu0 %1480, %v458
      %v1482 = vpop.permute.xlu0 %1481
      %1483 = vset.pattern.permute.xlu0 3
      %1484 = vperm.xlu0 %1483, %v459
      %v1485 = vpop.permute.xlu0 %1484
      %1486 = vset.pattern.permute.xlu0 3
      %1487 = vperm.xlu0 %1486, %v460
      %v1488 = vpop.permute.xlu0 %1487
      %1489 = vset.pattern.permute.xlu0 3
      %1490 = vperm.xlu0 %1489, %v461
      %v1491 = vpop.permute.xlu0 %1490
      %1492 = vset.pattern.permute.xlu0 3
      %1493 = vperm.xlu0 %1492, %v462
      %v1494 = vpop.permute.xlu0 %1493
      %vm1495 = vcmp.eq.s32.totalorder %v430, %v1449
      %vm1496 = vcmp.eq.s32.totalorder %v430, %v1452
      %vm1497 = vcmp.eq.s32.totalorder %v430, %v1455
      %vm1498 = vcmp.eq.s32.totalorder %v430, %v1458
      %vm1499 = vcmp.eq.s32.totalorder %v430, %v1461
      %vm1500 = vcmp.eq.s32.totalorder %v430, %v1464
      %vm1501 = vcmp.eq.s32.totalorder %v430, %v1467
      %vm1502 = vcmp.eq.s32.totalorder %v430, %v1470
      %vm1503 = vcmp.eq.s32.totalorder %v430, %v1473
      %vm1504 = vcmp.eq.s32.totalorder %v430, %v1476
      %vm1505 = vcmp.eq.s32.totalorder %v430, %v1479
      %vm1506 = vcmp.eq.s32.totalorder %v430, %v1482
      %vm1507 = vcmp.eq.s32.totalorder %v430, %v1485
      %vm1508 = vcmp.eq.s32.totalorder %v430, %v1488
      %vm1509 = vcmp.eq.s32.totalorder %v430, %v1491
      %vm1510 = vcmp.eq.s32.totalorder %v430, %v1494
      %v1511 = vsel %vm1495, 1.0, 0.0
      %v1512 = vsel %vm1496, 1.0, 0.0
      %v1513 = vsel %vm1497, 1.0, 0.0
      %v1514 = vsel %vm1498, 1.0, 0.0
      %v1515 = vsel %vm1499, 1.0, 0.0
      %v1516 = vsel %vm1500, 1.0, 0.0
      %v1517 = vsel %vm1501, 1.0, 0.0
      %v1518 = vsel %vm1502, 1.0, 0.0
      %v1519 = vsel %vm1503, 1.0, 0.0
      %v1520 = vsel %vm1504, 1.0, 0.0
      %v1521 = vsel %vm1505, 1.0, 0.0
      %v1522 = vsel %vm1506, 1.0, 0.0
      %v1523 = vsel %vm1507, 1.0, 0.0
      %v1524 = vsel %vm1508, 1.0, 0.0
      %v1525 = vsel %vm1509, 1.0, 0.0
      %v1526 = vsel %vm1510, 1.0, 0.0
      %v1527 = vpack.c.bf16 %v1512, %v1511
      %v1528 = vpack.c.bf16 %v1514, %v1513
      %v1529 = vpack.c.bf16 %v1516, %v1515
      %v1530 = vpack.c.bf16 %v1518, %v1517
      %v1531 = vpack.c.bf16 %v1520, %v1519
      %v1532 = vpack.c.bf16 %v1522, %v1521
      %v1533 = vpack.c.bf16 %v1524, %v1523
      %v1534 = vpack.c.bf16 %v1526, %v1525
      %1535 = vmatpush.bf16.msra.mxu0 %v590
      %1536 = vmatpush.bf16.msra.mxu0 %v589
      %1537 = vmatpush.bf16.msra.mxu0 %v588
      %1538 = vmatpush.bf16.msra.mxu0 %v587
      %1539 = vmatpush.bf16.msra.mxu0 %v586
      %1540 = vmatpush.bf16.msra.mxu0 %v585
      %1541 = vmatpush.bf16.msra.mxu0 %v584
      %1542 = vmatpush.bf16.msra.mxu0 %v583
      %1543 = vmatmul.bf16.gmra.mxu0 %v1527
      %v1544 = vpop.f32.mrf.mxu0
      %v1545 = vadd.f32 0.0, %v1544
      %v1546 = vpop.f32.mrf.mxu0
      %v1547 = vadd.f32 0.0, %v1546
      %1548 = vmatmul.bf16.gmra.mxu0 %v1528
      %v1549 = vpop.f32.mrf.mxu0
      %v1550 = vadd.f32 0.0, %v1549
      %v1551 = vpop.f32.mrf.mxu0
      %v1552 = vadd.f32 0.0, %v1551
      %1553 = vmatmul.bf16.gmra.mxu0 %v1529
      %v1554 = vpop.f32.mrf.mxu0
      %v1555 = vadd.f32 0.0, %v1554
      %v1556 = vpop.f32.mrf.mxu0
      %v1557 = vadd.f32 0.0, %v1556
      %1558 = vmatmul.bf16.gmra.mxu0 %v1530
      %v1559 = vpop.f32.mrf.mxu0
      %v1560 = vadd.f32 0.0, %v1559
      %v1561 = vpop.f32.mrf.mxu0
      %v1562 = vadd.f32 0.0, %v1561
      %1563 = vmatmul.bf16.gmra.mxu0 %v1531
      %v1564 = vpop.f32.mrf.mxu0
      %v1565 = vadd.f32 0.0, %v1564
      %v1566 = vpop.f32.mrf.mxu0
      %v1567 = vadd.f32 0.0, %v1566
      %1568 = vmatmul.bf16.gmra.mxu0 %v1532
      %v1569 = vpop.f32.mrf.mxu0
      %v1570 = vadd.f32 0.0, %v1569
      %v1571 = vpop.f32.mrf.mxu0
      %v1572 = vadd.f32 0.0, %v1571
      %1573 = vmatmul.bf16.gmra.mxu0 %v1533
      %v1574 = vpop.f32.mrf.mxu0
      %v1575 = vadd.f32 0.0, %v1574
      %v1576 = vpop.f32.mrf.mxu0
      %v1577 = vadd.f32 0.0, %v1576
      %1578 = vmatmul.bf16.gmra.mxu0 %v1534
      %v1579 = vpop.f32.mrf.mxu0
      %v1580 = vadd.f32 0.0, %v1579
      %v1581 = vpop.f32.mrf.mxu0
      %v1582 = vadd.f32 0.0, %v1581
      %1583 = vdwg.mxu0
      %v1584 = vadd.f32 %v1261, %v1545
      %v1585 = vadd.f32 %v1262, %v1547
      %v1586 = vadd.f32 %v1263, %v1550
      %v1587 = vadd.f32 %v1264, %v1552
      %v1588 = vadd.f32 %v1265, %v1555
      %v1589 = vadd.f32 %v1266, %v1557
      %v1590 = vadd.f32 %v1267, %v1560
      %v1591 = vadd.f32 %v1268, %v1562
      %v1592 = vadd.f32 %v1269, %v1565
      %v1593 = vadd.f32 %v1270, %v1567
      %v1594 = vadd.f32 %v1271, %v1570
      %v1595 = vadd.f32 %v1272, %v1572
      %v1596 = vadd.f32 %v1273, %v1575
      %v1597 = vadd.f32 %v1274, %v1577
      %v1598 = vadd.f32 %v1275, %v1580
      %v1599 = vadd.f32 %v1276, %v1582
      %v1600 = vmul.f32 %v1545, %v1545
      %v1601 = vmul.f32 %v1547, %v1547
      %v1602 = vmul.f32 %v1550, %v1550
      %v1603 = vmul.f32 %v1552, %v1552
      %v1604 = vmul.f32 %v1555, %v1555
      %v1605 = vmul.f32 %v1557, %v1557
      %v1606 = vmul.f32 %v1560, %v1560
      %v1607 = vmul.f32 %v1562, %v1562
      %v1608 = vmul.f32 %v1565, %v1565
      %v1609 = vmul.f32 %v1567, %v1567
      %v1610 = vmul.f32 %v1570, %v1570
      %v1611 = vmul.f32 %v1572, %v1572
      %v1612 = vmul.f32 %v1575, %v1575
      %v1613 = vmul.f32 %v1577, %v1577
      %v1614 = vmul.f32 %v1580, %v1580
      %v1615 = vmul.f32 %v1582, %v1582
      %v1616 = vadd.f32 %v1293, %v1600
      %v1617 = vadd.f32 %v1294, %v1601
      %v1618 = vadd.f32 %v1295, %v1602
      %v1619 = vadd.f32 %v1296, %v1603
      %v1620 = vadd.f32 %v1297, %v1604
      %v1621 = vadd.f32 %v1298, %v1605
      %v1622 = vadd.f32 %v1299, %v1606
      %v1623 = vadd.f32 %v1300, %v1607
      %v1624 = vadd.f32 %v1301, %v1608
      %v1625 = vadd.f32 %v1302, %v1609
      %v1626 = vadd.f32 %v1303, %v1610
      %v1627 = vadd.f32 %v1304, %v1611
      %v1628 = vadd.f32 %v1305, %v1612
      %v1629 = vadd.f32 %v1306, %v1613
      %v1630 = vadd.f32 %v1307, %v1614
      %v1631 = vadd.f32 %v1308, %v1615
      %v1632 = vpack.c.bf16 %v1547, %v1545
      %v1633 = vpack.c.bf16 %v1552, %v1550
      %v1634 = vpack.c.bf16 %v1557, %v1555
      %v1635 = vpack.c.bf16 %v1562, %v1560
      %v1636 = vpack.c.bf16 %v1567, %v1565
      %v1637 = vpack.c.bf16 %v1572, %v1570
      %v1638 = vpack.c.bf16 %v1577, %v1575
      %v1639 = vpack.c.bf16 %v1582, %v1580
      %s1640 = scalar_lea.vmem %s3, 192
      %v1641 = vld [vmem:[%s1640] sm:$0xf]
      %v1642 = vld [vmem:[%s1640 + $0x4] sm:$0xf]
      %v1643 = vld [vmem:[%s1640 + $0x8] sm:$0xf]
      %v1644 = vld [vmem:[%s1640 + $0xc] sm:$0xf]
      %v1645 = vld [vmem:[%s1640 + $0x10] sm:$0xf]
      %v1646 = vld [vmem:[%s1640 + $0x14] sm:$0xf]
      %v1647 = vld [vmem:[%s1640 + $0x18] sm:$0xf]
      %v1648 = vld [vmem:[%s1640 + $0x1c] sm:$0xf]
      %v1649 = vld [vmem:[%s1640 + $0x20] sm:$0xf]
      %v1650 = vld [vmem:[%s1640 + $0x24] sm:$0xf]
      %v1651 = vld [vmem:[%s1640 + $0x28] sm:$0xf]
      %v1652 = vld [vmem:[%s1640 + $0x2c] sm:$0xf]
      %v1653 = vld [vmem:[%s1640 + $0x30] sm:$0xf]
      %v1654 = vld [vmem:[%s1640 + $0x34] sm:$0xf]
      %v1655 = vld [vmem:[%s1640 + $0x38] sm:$0xf]
      %v1656 = vld [vmem:[%s1640 + $0x3c] sm:$0xf]
      %v1673 = vunpack.c.l.b16 %v1641
      %v1674 = vunpack.c.l.b16 %v1642
      %v1675 = vunpack.c.l.b16 %v1643
      %v1676 = vunpack.c.l.b16 %v1644
      %v1677 = vunpack.c.l.b16 %v1645
      %v1678 = vunpack.c.l.b16 %v1646
      %v1679 = vunpack.c.l.b16 %v1647
      %v1680 = vunpack.c.l.b16 %v1648
      %v1681 = vunpack.c.l.b16 %v1649
      %v1682 = vunpack.c.l.b16 %v1650
      %v1683 = vunpack.c.l.b16 %v1651
      %v1684 = vunpack.c.l.b16 %v1652
      %v1685 = vunpack.c.l.b16 %v1653
      %v1686 = vunpack.c.l.b16 %v1654
      %v1687 = vunpack.c.l.b16 %v1655
      %v1688 = vunpack.c.l.b16 %v1656
      %v1689 = vpack.c.b16 %v1674, %v1673
      %v1690 = vpack.c.b16 %v1676, %v1675
      %v1691 = vpack.c.b16 %v1678, %v1677
      %v1692 = vpack.c.b16 %v1680, %v1679
      %v1693 = vpack.c.b16 %v1682, %v1681
      %v1694 = vpack.c.b16 %v1684, %v1683
      %v1695 = vpack.c.b16 %v1686, %v1685
      %v1696 = vpack.c.b16 %v1688, %v1687
      %1705 = vmatpush.bf16.msra.mxu0 %v1696
      %1706 = vmatpush.bf16.msra.mxu0 %v1695
      %1707 = vmatpush.bf16.msra.mxu0 %v1694
      %1708 = vmatpush.bf16.msra.mxu0 %v1693
      %1709 = vmatpush.bf16.msra.mxu0 %v1692
      %1710 = vmatpush.bf16.msra.mxu0 %v1691
      %1711 = vmatpush.bf16.msra.mxu0 %v1690
      %1712 = vmatpush.bf16.msra.mxu0 %v1689
      %1713 = vmatmul.bf16.gmra.mxu0 %v1632
      %v1714 = vpop.f32.mrf.mxu0
      %v1715 = vadd.f32 0.0, %v1714
      %v1716 = vpop.f32.mrf.mxu0
      %v1717 = vadd.f32 0.0, %v1716
      %1718 = vmatmul.bf16.gmra.mxu0 %v1633
      %v1719 = vpop.f32.mrf.mxu0
      %v1720 = vadd.f32 0.0, %v1719
      %v1721 = vpop.f32.mrf.mxu0
      %v1722 = vadd.f32 0.0, %v1721
      %1723 = vmatmul.bf16.gmra.mxu0 %v1634
      %v1724 = vpop.f32.mrf.mxu0
      %v1725 = vadd.f32 0.0, %v1724
      %v1726 = vpop.f32.mrf.mxu0
      %v1727 = vadd.f32 0.0, %v1726
      %1728 = vmatmul.bf16.gmra.mxu0 %v1635
      %v1729 = vpop.f32.mrf.mxu0
      %v1730 = vadd.f32 0.0, %v1729
      %v1731 = vpop.f32.mrf.mxu0
      %v1732 = vadd.f32 0.0, %v1731
      %1733 = vmatmul.bf16.gmra.mxu0 %v1636
      %v1734 = vpop.f32.mrf.mxu0
      %v1735 = vadd.f32 0.0, %v1734
      %v1736 = vpop.f32.mrf.mxu0
      %v1737 = vadd.f32 0.0, %v1736
      %1738 = vmatmul.bf16.gmra.mxu0 %v1637
      %v1739 = vpop.f32.mrf.mxu0
      %v1740 = vadd.f32 0.0, %v1739
      %v1741 = vpop.f32.mrf.mxu0
      %v1742 = vadd.f32 0.0, %v1741
      %1743 = vmatmul.bf16.gmra.mxu0 %v1638
      %v1744 = vpop.f32.mrf.mxu0
      %v1745 = vadd.f32 0.0, %v1744
      %v1746 = vpop.f32.mrf.mxu0
      %v1747 = vadd.f32 0.0, %v1746
      %1748 = vmatmul.bf16.gmra.mxu0 %v1639
      %v1749 = vpop.f32.mrf.mxu0
      %v1750 = vadd.f32 0.0, %v1749
      %v1751 = vpop.f32.mrf.mxu0
      %v1752 = vadd.f32 0.0, %v1751
      %1753 = vdwg.mxu0
      %v1754 = vadd.f32 %v1431, %v1715
      %v1755 = vadd.f32 %v1432, %v1717
      %v1756 = vadd.f32 %v1433, %v1720
      %v1757 = vadd.f32 %v1434, %v1722
      %v1758 = vadd.f32 %v1435, %v1725
      %v1759 = vadd.f32 %v1436, %v1727
      %v1760 = vadd.f32 %v1437, %v1730
      %v1761 = vadd.f32 %v1438, %v1732
      %v1762 = vadd.f32 %v1439, %v1735
      %v1763 = vadd.f32 %v1440, %v1737
      %v1764 = vadd.f32 %v1441, %v1740
      %v1765 = vadd.f32 %v1442, %v1742
      %v1766 = vadd.f32 %v1443, %v1745
      %v1767 = vadd.f32 %v1444, %v1747
      %v1768 = vadd.f32 %v1445, %v1750
      %v1769 = vadd.f32 %v1446, %v1752
      %v1770 = vmul.f32 %v1584, %v1584
      %v1771 = vmul.f32 %v1585, %v1585
      %v1772 = vmul.f32 %v1586, %v1586
      %v1773 = vmul.f32 %v1587, %v1587
      %v1774 = vmul.f32 %v1588, %v1588
      %v1775 = vmul.f32 %v1589, %v1589
      %v1776 = vmul.f32 %v1590, %v1590
      %v1777 = vmul.f32 %v1591, %v1591
      %v1778 = vmul.f32 %v1592, %v1592
      %v1779 = vmul.f32 %v1593, %v1593
      %v1780 = vmul.f32 %v1594, %v1594
      %v1781 = vmul.f32 %v1595, %v1595
      %v1782 = vmul.f32 %v1596, %v1596
      %v1783 = vmul.f32 %v1597, %v1597
      %v1784 = vmul.f32 %v1598, %v1598
      %v1785 = vmul.f32 %v1599, %v1599
      %1786 = vmatpush.xpose.msra.mxu0 %v1785
      %1787 = vmatpush.xpose.msra.mxu0 %v1784
      %1788 = vmatpush.xpose.msra.mxu0 %v1783
      %1789 = vmatpush.xpose.msra.mxu0 %v1782
      %1790 = vmatpush.xpose.msra.mxu0 %v1781
      %1791 = vmatpush.xpose.msra.mxu0 %v1780
      %1792 = vmatpush.xpose.msra.mxu0 %v1779
      %1793 = vmatpush.xpose.msra.mxu0 %v1778
      %1794 = vmatpush.xpose.msra.mxu0 %v1777
      %1795 = vmatpush.xpose.msra.mxu0 %v1776
      %1796 = vmatpush.xpose.msra.mxu0 %v1775
      %1797 = vmatpush.xpose.msra.mxu0 %v1774
      %1798 = vmatpush.xpose.msra.mxu0 %v1773
      %1799 = vmatpush.xpose.msra.mxu0 %v1772
      %1800 = vmatpush.xpose.msra.mxu0 %v1771
      %1801 = vmatpush.xpose.msra.mxu0 %v1770
      %1802 = vmatmul.f32.gmra.mxu0 1.0
      %v1803 = vpop.f32.mrf.mxu0
      %v1804 = vadd.f32 0.0, %v1803
      %1805 = vdwg.mxu0
      %1806 = vmatpush.xpose.msra.mxu0 %v1631
      %1807 = vmatpush.xpose.msra.mxu0 %v1630
      %1808 = vmatpush.xpose.msra.mxu0 %v1629
      %1809 = vmatpush.xpose.msra.mxu0 %v1628
      %1810 = vmatpush.xpose.msra.mxu0 %v1627
      %1811 = vmatpush.xpose.msra.mxu0 %v1626
      %1812 = vmatpush.xpose.msra.mxu0 %v1625
      %1813 = vmatpush.xpose.msra.mxu0 %v1624
      %1814 = vmatpush.xpose.msra.mxu0 %v1623
      %1815 = vmatpush.xpose.msra.mxu0 %v1622
      %1816 = vmatpush.xpose.msra.mxu0 %v1621
      %1817 = vmatpush.xpose.msra.mxu0 %v1620
      %1818 = vmatpush.xpose.msra.mxu0 %v1619
      %1819 = vmatpush.xpose.msra.mxu0 %v1618
      %1820 = vmatpush.xpose.msra.mxu0 %v1617
      %1821 = vmatpush.xpose.msra.mxu0 %v1616
      %1822 = vmatmul.f32.gmra.mxu0 1.0
      %v1823 = vpop.f32.mrf.mxu0
      %v1824 = vadd.f32 0.0, %v1823
      %1825 = vdwg.mxu0
      %v1826 = vsub.f32 %v1804, %v1824
      %v1827 = vmul.f32 %v1826, 0.5
      %v1828 = vld [vmem:[%s4] sm:$0x1]
      %v1830 = vperm.slane %v1828, 0
      %v1832 = vadd.f32 %v1754, %v1830
      %v1833 = vadd.f32 %v1755, %v1830
      %v1834 = vadd.f32 %v1756, %v1830
      %v1835 = vadd.f32 %v1757, %v1830
      %v1836 = vadd.f32 %v1758, %v1830
      %v1837 = vadd.f32 %v1759, %v1830
      %v1838 = vadd.f32 %v1760, %v1830
      %v1839 = vadd.f32 %v1761, %v1830
      %v1840 = vadd.f32 %v1762, %v1830
      %v1841 = vadd.f32 %v1763, %v1830
      %v1842 = vadd.f32 %v1764, %v1830
      %v1843 = vadd.f32 %v1765, %v1830
      %v1844 = vadd.f32 %v1766, %v1830
      %v1845 = vadd.f32 %v1767, %v1830
      %v1846 = vadd.f32 %v1768, %v1830
      %v1847 = vadd.f32 %v1769, %v1830
      %1848 = vmatpush.msra.mxu0 %v1847
      %1849 = vmatpush.msra.mxu0 %v1846
      %1850 = vmatpush.msra.mxu0 %v1845
      %1851 = vmatpush.msra.mxu0 %v1844
      %1852 = vmatpush.msra.mxu0 %v1843
      %1853 = vmatpush.msra.mxu0 %v1842
      %1854 = vmatpush.msra.mxu0 %v1841
      %1855 = vmatpush.msra.mxu0 %v1840
      %1856 = vmatpush.msra.mxu0 %v1839
      %1857 = vmatpush.msra.mxu0 %v1838
      %1858 = vmatpush.msra.mxu0 %v1837
      %1859 = vmatpush.msra.mxu0 %v1836
      %1860 = vmatpush.msra.mxu0 %v1835
      %1861 = vmatpush.msra.mxu0 %v1834
      %1862 = vmatpush.msra.mxu0 %v1833
      %1863 = vmatpush.msra.mxu0 %v1832
      %1864 = vmatmul.f32.gmra.mxu0 1.0
      %v1865 = vpop.f32.mrf.mxu0
      %v1866 = vadd.f32 0.0, %v1865
      %1867 = vdwg.mxu0
      %v1868 = vmul.f32 %v1866, 0.0078125
      %v1869 = vmul.f32 %v1832, %v1832
      %v1870 = vmul.f32 %v1833, %v1833
      %v1871 = vmul.f32 %v1834, %v1834
      %v1872 = vmul.f32 %v1835, %v1835
      %v1873 = vmul.f32 %v1836, %v1836
      %v1874 = vmul.f32 %v1837, %v1837
      %v1875 = vmul.f32 %v1838, %v1838
      %v1876 = vmul.f32 %v1839, %v1839
      %v1877 = vmul.f32 %v1840, %v1840
      %v1878 = vmul.f32 %v1841, %v1841
      %v1879 = vmul.f32 %v1842, %v1842
      %v1880 = vmul.f32 %v1843, %v1843
      %v1881 = vmul.f32 %v1844, %v1844
      %v1882 = vmul.f32 %v1845, %v1845
      %v1883 = vmul.f32 %v1846, %v1846
      %v1884 = vmul.f32 %v1847, %v1847
      %1885 = vmatpush.msra.mxu0 %v1884
      %1886 = vmatpush.msra.mxu0 %v1883
      %1887 = vmatpush.msra.mxu0 %v1882
      %1888 = vmatpush.msra.mxu0 %v1881
      %1889 = vmatpush.msra.mxu0 %v1880
      %1890 = vmatpush.msra.mxu0 %v1879
      %1891 = vmatpush.msra.mxu0 %v1878
      %1892 = vmatpush.msra.mxu0 %v1877
      %1893 = vmatpush.msra.mxu0 %v1876
      %1894 = vmatpush.msra.mxu0 %v1875
      %1895 = vmatpush.msra.mxu0 %v1874
      %1896 = vmatpush.msra.mxu0 %v1873
      %1897 = vmatpush.msra.mxu0 %v1872
      %1898 = vmatpush.msra.mxu0 %v1871
      %1899 = vmatpush.msra.mxu0 %v1870
      %1900 = vmatpush.msra.mxu0 %v1869
      %1901 = vmatmul.f32.gmra.mxu0 1.0
      %v1902 = vpop.f32.mrf.mxu0
      %v1903 = vadd.f32 0.0, %v1902
      %1904 = vdwg.mxu0
      %v1905 = vmul.f32 %v1903, 0.0078125
      %v1906 = vmul.f32 %v1868, %v1868
      %v1907 = vsub.f32 %v1905, %v1906
      %v1908 = vmax.f32 %v1907, 0.0
      %v1909 = vperm.slane %v1868, 0
      %v1910 = vsub.f32 %v1832, %v1909
      %v1911 = vsub.f32 %v1833, %v1909
      %v1912 = vsub.f32 %v1834, %v1909
      %v1913 = vsub.f32 %v1835, %v1909
      %v1914 = vsub.f32 %v1836, %v1909
      %v1915 = vsub.f32 %v1837, %v1909
      %v1916 = vsub.f32 %v1838, %v1909
      %v1917 = vsub.f32 %v1839, %v1909
      %v1918 = vsub.f32 %v1840, %v1909
      %v1919 = vsub.f32 %v1841, %v1909
      %v1920 = vsub.f32 %v1842, %v1909
      %v1921 = vsub.f32 %v1843, %v1909
      %v1922 = vsub.f32 %v1844, %v1909
      %v1923 = vsub.f32 %v1845, %v1909
      %v1924 = vsub.f32 %v1846, %v1909
      %v1925 = vsub.f32 %v1847, %v1909
      %v1926 = vadd.f32 %v1908, 1e-05
      %v1927 = vrsqrt.pop %v1926
      %v1928 = vmul.f32 %v1927, %v1926
      %v1929 = vmul.f32 %v1928, %v1927
      %v1930 = vmul.f32 0.5, %v1929
      %v1931 = vsub.f32 1.5, %v1930
      %v1932 = vmul.f32 %v1927, %v1931
      %vm1933 = vweird.f32 %v1926
      %vm1934 = vweird.f32 %v1927
      %vm1935 = vmor %vm1933, %vm1934
      %v1936 = vsel %vm1935, %v1927, %v1932
      %v1937 = vperm.slane %v1936, 0
      %v1938 = vmul.f32 %v1910, %v1937
      %v1939 = vmul.f32 %v1911, %v1937
      %v1940 = vmul.f32 %v1912, %v1937
      %v1941 = vmul.f32 %v1913, %v1937
      %v1942 = vmul.f32 %v1914, %v1937
      %v1943 = vmul.f32 %v1915, %v1937
      %v1944 = vmul.f32 %v1916, %v1937
      %v1945 = vmul.f32 %v1917, %v1937
      %v1946 = vmul.f32 %v1918, %v1937
      %v1947 = vmul.f32 %v1919, %v1937
      %v1948 = vmul.f32 %v1920, %v1937
      %v1949 = vmul.f32 %v1921, %v1937
      %v1950 = vmul.f32 %v1922, %v1937
      %v1951 = vmul.f32 %v1923, %v1937
      %v1952 = vmul.f32 %v1924, %v1937
      %v1953 = vmul.f32 %v1925, %v1937
      %v1954 = vld [vmem:[%s5] sm:$0x1]
      %v1956 = vperm.slane %v1954, 0
      %v1958 = vmul.f32 %v1938, %v1956
      %v1959 = vmul.f32 %v1939, %v1956
      %v1960 = vmul.f32 %v1940, %v1956
      %v1961 = vmul.f32 %v1941, %v1956
      %v1962 = vmul.f32 %v1942, %v1956
      %v1963 = vmul.f32 %v1943, %v1956
      %v1964 = vmul.f32 %v1944, %v1956
      %v1965 = vmul.f32 %v1945, %v1956
      %v1966 = vmul.f32 %v1946, %v1956
      %v1967 = vmul.f32 %v1947, %v1956
      %v1968 = vmul.f32 %v1948, %v1956
      %v1969 = vmul.f32 %v1949, %v1956
      %v1970 = vmul.f32 %v1950, %v1956
      %v1971 = vmul.f32 %v1951, %v1956
      %v1972 = vmul.f32 %v1952, %v1956
      %v1973 = vmul.f32 %v1953, %v1956
      %v1974 = vld [vmem:[%s6] sm:$0x1]
      %v1976 = vperm.slane %v1974, 0
      %v1978 = vadd.f32 %v1958, %v1976
      %v1979 = vadd.f32 %v1959, %v1976
      %v1980 = vadd.f32 %v1960, %v1976
      %v1981 = vadd.f32 %v1961, %v1976
      %v1982 = vadd.f32 %v1962, %v1976
      %v1983 = vadd.f32 %v1963, %v1976
      %v1984 = vadd.f32 %v1964, %v1976
      %v1985 = vadd.f32 %v1965, %v1976
      %v1986 = vadd.f32 %v1966, %v1976
      %v1987 = vadd.f32 %v1967, %v1976
      %v1988 = vadd.f32 %v1968, %v1976
      %v1989 = vadd.f32 %v1969, %v1976
      %v1990 = vadd.f32 %v1970, %v1976
      %v1991 = vadd.f32 %v1971, %v1976
      %v1992 = vadd.f32 %v1972, %v1976
      %v1993 = vadd.f32 %v1973, %v1976
      %v1994 = vmax.f32 %v1978, 0.0
      %v1995 = vmax.f32 %v1979, 0.0
      %v1996 = vmax.f32 %v1980, 0.0
      %v1997 = vmax.f32 %v1981, 0.0
      %v1998 = vmax.f32 %v1982, 0.0
      %v1999 = vmax.f32 %v1983, 0.0
      %v2000 = vmax.f32 %v1984, 0.0
      %v2001 = vmax.f32 %v1985, 0.0
      %v2002 = vmax.f32 %v1986, 0.0
      %v2003 = vmax.f32 %v1987, 0.0
      %v2004 = vmax.f32 %v1988, 0.0
      %v2005 = vmax.f32 %v1989, 0.0
      %v2006 = vmax.f32 %v1990, 0.0
      %v2007 = vmax.f32 %v1991, 0.0
      %v2008 = vmax.f32 %v1992, 0.0
      %v2009 = vmax.f32 %v1993, 0.0
      %v2010 = vpack.c.bf16 %v1995, %v1994
      %v2011 = vpack.c.bf16 %v1997, %v1996
      %v2012 = vpack.c.bf16 %v1999, %v1998
      %v2013 = vpack.c.bf16 %v2001, %v2000
      %v2014 = vpack.c.bf16 %v2003, %v2002
      %v2015 = vpack.c.bf16 %v2005, %v2004
      %v2016 = vpack.c.bf16 %v2007, %v2006
      %v2017 = vpack.c.bf16 %v2009, %v2008
      %v2018 = vld [vmem:[%s7] sm:$0xf]
      %v2019 = vld [vmem:[%s7 + $0x4] sm:$0xf]
      %v2020 = vld [vmem:[%s7 + $0x8] sm:$0xf]
      %v2021 = vld [vmem:[%s7 + $0xc] sm:$0xf]
      %v2022 = vld [vmem:[%s7 + $0x10] sm:$0xf]
      %v2023 = vld [vmem:[%s7 + $0x14] sm:$0xf]
      %v2024 = vld [vmem:[%s7 + $0x18] sm:$0xf]
      %v2025 = vld [vmem:[%s7 + $0x1c] sm:$0xf]
      %v2026 = vld [vmem:[%s7 + $0x20] sm:$0xf]
      %v2027 = vld [vmem:[%s7 + $0x24] sm:$0xf]
      %v2028 = vld [vmem:[%s7 + $0x28] sm:$0xf]
      %v2029 = vld [vmem:[%s7 + $0x2c] sm:$0xf]
      %v2030 = vld [vmem:[%s7 + $0x30] sm:$0xf]
      %v2031 = vld [vmem:[%s7 + $0x34] sm:$0xf]
      %v2032 = vld [vmem:[%s7 + $0x38] sm:$0xf]
      %v2033 = vld [vmem:[%s7 + $0x3c] sm:$0xf]
      %v2034 = vld [vmem:[%s8] sm:$0x1]
      %v2036 = vperm.slane %v2034, 0
      %v2054 = vunpack.c.l.b16 %v2018
      %v2055 = vunpack.c.l.b16 %v2019
      %v2056 = vunpack.c.l.b16 %v2020
      %v2057 = vunpack.c.l.b16 %v2021
      %v2058 = vunpack.c.l.b16 %v2022
      %v2059 = vunpack.c.l.b16 %v2023
      %v2060 = vunpack.c.l.b16 %v2024
      %v2061 = vunpack.c.l.b16 %v2025
      %v2062 = vunpack.c.l.b16 %v2026
      %v2063 = vunpack.c.l.b16 %v2027
      %v2064 = vunpack.c.l.b16 %v2028
      %v2065 = vunpack.c.l.b16 %v2029
      %v2066 = vunpack.c.l.b16 %v2030
      %v2067 = vunpack.c.l.b16 %v2031
      %v2068 = vunpack.c.l.b16 %v2032
      %v2069 = vunpack.c.l.b16 %v2033
      %v2070 = vpack.c.b16 %v2055, %v2054
      %v2071 = vpack.c.b16 %v2057, %v2056
      %v2072 = vpack.c.b16 %v2059, %v2058
      %v2073 = vpack.c.b16 %v2061, %v2060
      %v2074 = vpack.c.b16 %v2063, %v2062
      %v2075 = vpack.c.b16 %v2065, %v2064
      %v2076 = vpack.c.b16 %v2067, %v2066
      %v2077 = vpack.c.b16 %v2069, %v2068
      %2086 = vmatpush.bf16.msra.mxu0 %v2077
      %2087 = vmatpush.bf16.msra.mxu0 %v2076
      %2088 = vmatpush.bf16.msra.mxu0 %v2075
      %2089 = vmatpush.bf16.msra.mxu0 %v2074
      %2090 = vmatpush.bf16.msra.mxu0 %v2073
      %2091 = vmatpush.bf16.msra.mxu0 %v2072
      %2092 = vmatpush.bf16.msra.mxu0 %v2071
      %2093 = vmatpush.bf16.msra.mxu0 %v2070
      %2094 = vmatmul.bf16.gmra.mxu0 %v2010
      %v2095 = vpop.f32.mrf.mxu0
      %v2096 = vadd.f32 %v2036, %v2095
      %v2097 = vpop.f32.mrf.mxu0
      %v2098 = vadd.f32 %v2036, %v2097
      %2099 = vmatmul.bf16.gmra.mxu0 %v2011
      %v2100 = vpop.f32.mrf.mxu0
      %v2101 = vadd.f32 %v2036, %v2100
      %v2102 = vpop.f32.mrf.mxu0
      %v2103 = vadd.f32 %v2036, %v2102
      %2104 = vmatmul.bf16.gmra.mxu0 %v2012
      %v2105 = vpop.f32.mrf.mxu0
      %v2106 = vadd.f32 %v2036, %v2105
      %v2107 = vpop.f32.mrf.mxu0
      %v2108 = vadd.f32 %v2036, %v2107
      %2109 = vmatmul.bf16.gmra.mxu0 %v2013
      %v2110 = vpop.f32.mrf.mxu0
      %v2111 = vadd.f32 %v2036, %v2110
      %v2112 = vpop.f32.mrf.mxu0
      %v2113 = vadd.f32 %v2036, %v2112
      %2114 = vmatmul.bf16.gmra.mxu0 %v2014
      %v2115 = vpop.f32.mrf.mxu0
      %v2116 = vadd.f32 %v2036, %v2115
      %v2117 = vpop.f32.mrf.mxu0
      %v2118 = vadd.f32 %v2036, %v2117
      %2119 = vmatmul.bf16.gmra.mxu0 %v2015
      %v2120 = vpop.f32.mrf.mxu0
      %v2121 = vadd.f32 %v2036, %v2120
      %v2122 = vpop.f32.mrf.mxu0
      %v2123 = vadd.f32 %v2036, %v2122
      %2124 = vmatmul.bf16.gmra.mxu0 %v2016
      %v2125 = vpop.f32.mrf.mxu0
      %v2126 = vadd.f32 %v2036, %v2125
      %v2127 = vpop.f32.mrf.mxu0
      %v2128 = vadd.f32 %v2036, %v2127
      %2129 = vmatmul.bf16.gmra.mxu0 %v2017
      %v2130 = vpop.f32.mrf.mxu0
      %v2131 = vadd.f32 %v2036, %v2130
      %v2132 = vpop.f32.mrf.mxu0
      %v2133 = vadd.f32 %v2036, %v2132
      %2134 = vdwg.mxu0
      %2135 = vmatpush.msra.mxu0 %v2133
      %2136 = vmatpush.msra.mxu0 %v2131
      %2137 = vmatpush.msra.mxu0 %v2128
      %2138 = vmatpush.msra.mxu0 %v2126
      %2139 = vmatpush.msra.mxu0 %v2123
      %2140 = vmatpush.msra.mxu0 %v2121
      %2141 = vmatpush.msra.mxu0 %v2118
      %2142 = vmatpush.msra.mxu0 %v2116
      %2143 = vmatpush.msra.mxu0 %v2113
      %2144 = vmatpush.msra.mxu0 %v2111
      %2145 = vmatpush.msra.mxu0 %v2108
      %2146 = vmatpush.msra.mxu0 %v2106
      %2147 = vmatpush.msra.mxu0 %v2103
      %2148 = vmatpush.msra.mxu0 %v2101
      %2149 = vmatpush.msra.mxu0 %v2098
      %2150 = vmatpush.msra.mxu0 %v2096
      %2151 = vmatmul.f32.gmra.mxu0 1.0
      %v2152 = vpop.f32.mrf.mxu0
      %v2153 = vadd.f32 0.0, %v2152
      %2154 = vdwg.mxu0
      %v2155 = vmul.f32 %v2153, 0.0078125
      %v2156 = vmul.f32 %v2096, %v2096
      %v2157 = vmul.f32 %v2098, %v2098
      %v2158 = vmul.f32 %v2101, %v2101
      %v2159 = vmul.f32 %v2103, %v2103
      %v2160 = vmul.f32 %v2106, %v2106
      %v2161 = vmul.f32 %v2108, %v2108
      %v2162 = vmul.f32 %v2111, %v2111
      %v2163 = vmul.f32 %v2113, %v2113
      %v2164 = vmul.f32 %v2116, %v2116
      %v2165 = vmul.f32 %v2118, %v2118
      %v2166 = vmul.f32 %v2121, %v2121
      %v2167 = vmul.f32 %v2123, %v2123
      %v2168 = vmul.f32 %v2126, %v2126
      %v2169 = vmul.f32 %v2128, %v2128
      %v2170 = vmul.f32 %v2131, %v2131
      %v2171 = vmul.f32 %v2133, %v2133
      %2172 = vmatpush.msra.mxu0 %v2171
      %2173 = vmatpush.msra.mxu0 %v2170
      %2174 = vmatpush.msra.mxu0 %v2169
      %2175 = vmatpush.msra.mxu0 %v2168
      %2176 = vmatpush.msra.mxu0 %v2167
      %2177 = vmatpush.msra.mxu0 %v2166
      %2178 = vmatpush.msra.mxu0 %v2165
      %2179 = vmatpush.msra.mxu0 %v2164
      %2180 = vmatpush.msra.mxu0 %v2163
      %2181 = vmatpush.msra.mxu0 %v2162
      %2182 = vmatpush.msra.mxu0 %v2161
      %2183 = vmatpush.msra.mxu0 %v2160
      %2184 = vmatpush.msra.mxu0 %v2159
      %2185 = vmatpush.msra.mxu0 %v2158
      %2186 = vmatpush.msra.mxu0 %v2157
      %2187 = vmatpush.msra.mxu0 %v2156
      %2188 = vmatmul.f32.gmra.mxu0 1.0
      %v2189 = vpop.f32.mrf.mxu0
      %v2190 = vadd.f32 0.0, %v2189
      %2191 = vdwg.mxu0
      %v2192 = vmul.f32 %v2190, 0.0078125
      %v2193 = vmul.f32 %v2155, %v2155
      %v2194 = vsub.f32 %v2192, %v2193
      %v2195 = vmax.f32 %v2194, 0.0
      %v2196 = vperm.slane %v2155, 0
      %v2197 = vsub.f32 %v2096, %v2196
      %v2198 = vsub.f32 %v2098, %v2196
      %v2199 = vsub.f32 %v2101, %v2196
      %v2200 = vsub.f32 %v2103, %v2196
      %v2201 = vsub.f32 %v2106, %v2196
      %v2202 = vsub.f32 %v2108, %v2196
      %v2203 = vsub.f32 %v2111, %v2196
      %v2204 = vsub.f32 %v2113, %v2196
      %v2205 = vsub.f32 %v2116, %v2196
      %v2206 = vsub.f32 %v2118, %v2196
      %v2207 = vsub.f32 %v2121, %v2196
      %v2208 = vsub.f32 %v2123, %v2196
      %v2209 = vsub.f32 %v2126, %v2196
      %v2210 = vsub.f32 %v2128, %v2196
      %v2211 = vsub.f32 %v2131, %v2196
      %v2212 = vsub.f32 %v2133, %v2196
      %v2213 = vadd.f32 %v2195, 1e-05
      %v2214 = vrsqrt.pop %v2213
      %v2215 = vmul.f32 %v2214, %v2213
      %v2216 = vmul.f32 %v2215, %v2214
      %v2217 = vmul.f32 0.5, %v2216
      %v2218 = vsub.f32 1.5, %v2217
      %v2219 = vmul.f32 %v2214, %v2218
      %vm2220 = vweird.f32 %v2213
      %vm2221 = vweird.f32 %v2214
      %vm2222 = vmor %vm2220, %vm2221
      %v2223 = vsel %vm2222, %v2214, %v2219
      %v2224 = vperm.slane %v2223, 0
      %v2225 = vmul.f32 %v2197, %v2224
      %v2226 = vmul.f32 %v2198, %v2224
      %v2227 = vmul.f32 %v2199, %v2224
      %v2228 = vmul.f32 %v2200, %v2224
      %v2229 = vmul.f32 %v2201, %v2224
      %v2230 = vmul.f32 %v2202, %v2224
      %v2231 = vmul.f32 %v2203, %v2224
      %v2232 = vmul.f32 %v2204, %v2224
      %v2233 = vmul.f32 %v2205, %v2224
      %v2234 = vmul.f32 %v2206, %v2224
      %v2235 = vmul.f32 %v2207, %v2224
      %v2236 = vmul.f32 %v2208, %v2224
      %v2237 = vmul.f32 %v2209, %v2224
      %v2238 = vmul.f32 %v2210, %v2224
      %v2239 = vmul.f32 %v2211, %v2224
      %v2240 = vmul.f32 %v2212, %v2224
      %v2241 = vld [vmem:[%s9] sm:$0x1]
      %v2243 = vperm.slane %v2241, 0
      %v2245 = vmul.f32 %v2225, %v2243
      %v2246 = vmul.f32 %v2226, %v2243
      %v2247 = vmul.f32 %v2227, %v2243
      %v2248 = vmul.f32 %v2228, %v2243
      %v2249 = vmul.f32 %v2229, %v2243
      %v2250 = vmul.f32 %v2230, %v2243
      %v2251 = vmul.f32 %v2231, %v2243
      %v2252 = vmul.f32 %v2232, %v2243
      %v2253 = vmul.f32 %v2233, %v2243
      %v2254 = vmul.f32 %v2234, %v2243
      %v2255 = vmul.f32 %v2235, %v2243
      %v2256 = vmul.f32 %v2236, %v2243
      %v2257 = vmul.f32 %v2237, %v2243
      %v2258 = vmul.f32 %v2238, %v2243
      %v2259 = vmul.f32 %v2239, %v2243
      %v2260 = vmul.f32 %v2240, %v2243
      %v2261 = vld [vmem:[%s10] sm:$0x1]
      %v2263 = vperm.slane %v2261, 0
      %v2265 = vadd.f32 %v2245, %v2263
      %v2266 = vadd.f32 %v2246, %v2263
      %v2267 = vadd.f32 %v2247, %v2263
      %v2268 = vadd.f32 %v2248, %v2263
      %v2269 = vadd.f32 %v2249, %v2263
      %v2270 = vadd.f32 %v2250, %v2263
      %v2271 = vadd.f32 %v2251, %v2263
      %v2272 = vadd.f32 %v2252, %v2263
      %v2273 = vadd.f32 %v2253, %v2263
      %v2274 = vadd.f32 %v2254, %v2263
      %v2275 = vadd.f32 %v2255, %v2263
      %v2276 = vadd.f32 %v2256, %v2263
      %v2277 = vadd.f32 %v2257, %v2263
      %v2278 = vadd.f32 %v2258, %v2263
      %v2279 = vadd.f32 %v2259, %v2263
      %v2280 = vadd.f32 %v2260, %v2263
      %v2281 = vmax.f32 %v2265, 0.0
      %v2282 = vmax.f32 %v2266, 0.0
      %v2283 = vmax.f32 %v2267, 0.0
      %v2284 = vmax.f32 %v2268, 0.0
      %v2285 = vmax.f32 %v2269, 0.0
      %v2286 = vmax.f32 %v2270, 0.0
      %v2287 = vmax.f32 %v2271, 0.0
      %v2288 = vmax.f32 %v2272, 0.0
      %v2289 = vmax.f32 %v2273, 0.0
      %v2290 = vmax.f32 %v2274, 0.0
      %v2291 = vmax.f32 %v2275, 0.0
      %v2292 = vmax.f32 %v2276, 0.0
      %v2293 = vmax.f32 %v2277, 0.0
      %v2294 = vmax.f32 %v2278, 0.0
      %v2295 = vmax.f32 %v2279, 0.0
      %v2296 = vmax.f32 %v2280, 0.0
      %v2297 = vld [vmem:[%s11] sm:$0x1]
      %2298 = vmatpush.xpose.msra.mxu0 %v2296
      %2299 = vmatpush.xpose.msra.mxu0 %v2295
      %2300 = vmatpush.xpose.msra.mxu0 %v2294
      %2301 = vmatpush.xpose.msra.mxu0 %v2293
      %2302 = vmatpush.xpose.msra.mxu0 %v2292
      %2303 = vmatpush.xpose.msra.mxu0 %v2291
      %2304 = vmatpush.xpose.msra.mxu0 %v2290
      %2305 = vmatpush.xpose.msra.mxu0 %v2289
      %2306 = vmatpush.xpose.msra.mxu0 %v2288
      %2307 = vmatpush.xpose.msra.mxu0 %v2287
      %2308 = vmatpush.xpose.msra.mxu0 %v2286
      %2309 = vmatpush.xpose.msra.mxu0 %v2285
      %2310 = vmatpush.xpose.msra.mxu0 %v2284
      %2311 = vmatpush.xpose.msra.mxu0 %v2283
      %2312 = vmatpush.xpose.msra.mxu0 %v2282
      %2313 = vmatpush.xpose.msra.mxu0 %v2281
      %2314 = vmatmul.f32.gmra.mxu0 %v2297
      %v2315 = vpop.f32.mrf.mxu0
      %v2316 = vadd.f32 0.0, %v2315
      %2317 = vdwg.mxu0
      %v2318 = vld [vmem:[%s425] sm:$0x1]
      %v2319 = vld [vmem:[%s425 + $0x1] sm:$0x1]
      %v2320 = vadd.f32 %v2318, %v1827
      %v2321 = vadd.f32 %v2320, %v2316
      %v2322 = vmax.f32 %v2321, 0.0
      %v2323 = vmul.f32 %v2321, %v2319
      %v2324 = vsub.f32 %v2322, %v2323
      %v2325 = vand.u32 2147483647, %v2321
      %v2326 = vsub.f32 0.0, %v2325
      %v2327 = vmul.f32 %v2326, 1.442695
      %v2328 = vpow.pop %v2327
      %v2329 = vadd.f32 %v2328, 1.0
      %v2330 = vlog2.pop %v2329
      %v2331 = vmul.f32 %v2330, 0.6931472
      %v2332 = vadd.f32 %v2324, %v2331
      %2333 = vst [vmem:[%s428] sm:$0x1] %v2332
      %p2334 = scmp.lt.s32.totalorder %s23, 1
      %s2335 = scalar_select %p2334, %s23, 1
      %s2336 = scalar_lea.vmem %s12, %s2335
      // Predicated region
      $region69: #{deepfm_forward.1} parent=67 // pred_check
        %p2337 = pneg %p303
      $region70: #{deepfm_forward.1} parent=67 // pred_check_branch
        %2339 = sbr.rel (%p2337) target = $region72
      $region71: #{deepfm_forward.1} parent=67 // pred_region
        _
      $region72: #{deepfm_forward.1} parent=67 // pred_fallthru
        _
    $region68: #{deepfm_forward.1} parent=5 // pred_fallthru
      _
    %p2340 = scmp.le.s32.totalorder 2, %s18
    // Predicated region
    $region73: #{deepfm_forward.1} parent=5 // pred_check
      %p2341 = pneg %p2340
    $region74: #{deepfm_forward.1} parent=5 // pred_check_branch
      %2343 = sbr.rel (%p2341) target = $region76
    $region75: #{deepfm_forward.1} parent=5 // pred_region
      %s2344 = ssub.s32 %s18, 2
      // Predicated region
      $region77: #{deepfm_forward.1} parent=75 // pred_check
        %p2345 = pneg %p309
      $region78: #{deepfm_forward.1} parent=75 // pred_check_branch
        %2347 = sbr.rel (%p2345) target = $region80
      $region79: #{deepfm_forward.1} parent=75 // pred_region
        %p2348 = scmp.lt.s32.totalorder %s24, 1
        %s2349 = scalar_select %p2348, %s24, 1
        %s2350 = scalar_lea.vmem %s12, %s2349
      $region80: #{deepfm_forward.1} parent=75 // pred_fallthru
        _
    $region76: #{deepfm_forward.1} parent=5 // pred_fallthru
      _
  $region6: #{deepfm_forward.1} parent=0 // loop_footer
    %s22 = sadd.s32 1, %s18
  $region7: #{deepfm_forward.1} parent=0 // loop_footer_branch
    %17 = sbr.rel target = $region3
  $region8: #{deepfm_forward.1} parent=0 // loop_exit
    _

</llo_original>
